<compile_context>
chip_gen: v7x
topology: tpu7x:2x2x1
jax: 0.10.0
libtpu: 0.0.40
codegen_flags: <defaults>
</compile_context>

<pallas_src>
import functools

import jax
import jax.numpy as jnp
from jax import lax
from jax.experimental import pallas as pl
from jax.experimental.pallas import tpu as pltpu


# ----------------------------------------------------------------------------
# nn.Linear : y = x @ W^T + b
# ----------------------------------------------------------------------------
def _linear_kernel(x_ref, w_ref, b_ref, o_ref):
    o_ref[...] = (jnp.dot(x_ref[...], w_ref[...],
                          preferred_element_type=jnp.float32) + b_ref[...])


def linear_pallas(x, w_t, b):
    # x: (N, Fin), w_t: (Fin, Fout)  (already transposed vs torch), b: (Fout,)
    n, fi = x.shape
    fo = w_t.shape[1]
    return pl.pallas_call(
        _linear_kernel,
        grid=(1,),
        in_specs=[pl.BlockSpec((n, fi), lambda i: (0, 0)),
                  pl.BlockSpec((fi, fo), lambda i: (0, 0)),
                  pl.BlockSpec((1, fo), lambda i: (0, 0))],
        out_specs=pl.BlockSpec((n, fo), lambda i: (0, 0)),
        out_shape=jax.ShapeDtypeStruct((n, fo), jnp.float32),
    )(x, w_t, b.reshape(1, fo))


# ----------------------------------------------------------------------------
# nn.BatchNorm3d (training-mode batch stats) + nn.LeakyReLU, fused
# ----------------------------------------------------------------------------
def _bn_stats_kernel(x_ref, s_ref, q_ref):
    @pl.when(pl.program_id(0) == 0)
    def _():
        s_ref[...] = jnp.zeros_like(s_ref)
        q_ref[...] = jnp.zeros_like(q_ref)

    x = x_ref[...]
    s_ref[...] += jnp.sum(x, axis=1, keepdims=True)
    q_ref[...] += jnp.sum(x * x, axis=1, keepdims=True)


def _bn_norm_kernel(x_ref, sc_ref, sh_ref, o_ref, *, slope):
    y = x_ref[...] * sc_ref[...] + sh_ref[...]
    o_ref[...] = jnp.where(y >= 0.0, y, slope * y)


def batchnorm3d_leakyrelu_pallas(x, gamma, beta, eps=1e-5, slope=0.01):
    # x: (N, C, D, H, W) float32.  Natural-layout (N*C, D*H*W) view: no
    # transposes are materialized, only a small lane pad.
    # TODO(synk): train-mode BN also updates running_mean/var buffers; that
    # bookkeeping does not affect the forward output and is omitted here.
    n, c, d, h, w = x.shape
    ltot = d * h * w
    rows = n * c
    xr = x.reshape(rows, ltot)

    lt_max = 32768
    lp = -(-ltot // 128) * 128
    n_chunks = -(-lp // lt_max)
    lt = -(-(-(-lp // n_chunks)) // 128) * 128
    lpp = lt * n_chunks
    xp = jnp.pad(xr, ((0, 0), (0, lpp - ltot)))

    s, q = pl.pallas_call(
        _bn_stats_kernel,
        grid=(n_chunks,),
        in_specs=[pl.BlockSpec((rows, lt), lambda i: (0, i))],
        out_specs=(pl.BlockSpec((rows, 1), lambda i: (0, 0)),
                   pl.BlockSpec((rows, 1), lambda i: (0, 0))),
        out_shape=(jax.ShapeDtypeStruct((rows, 1), jnp.float32),
                   jax.ShapeDtypeStruct((rows, 1), jnp.float32)),
        compiler_params=pltpu.CompilerParams(
            dimension_semantics=("arbitrary",)),
    )(xp)

    count = n * ltot
    s_c = s.reshape(n, c).sum(axis=0)
    q_c = q.reshape(n, c).sum(axis=0)
    mean = s_c / count
    var = q_c / count - mean * mean                    # biased variance
    scale_c = gamma * lax.rsqrt(var + eps)
    shift_c = beta - mean * scale_c
    scale_r = jnp.tile(scale_c, n).reshape(rows, 1)
    shift_r = jnp.tile(shift_c, n).reshape(rows, 1)

    y = pl.pallas_call(
        functools.partial(_bn_norm_kernel, slope=slope),
        grid=(n_chunks,),
        in_specs=[pl.BlockSpec((rows, lt), lambda i: (0, i)),
                  pl.BlockSpec((rows, 1), lambda i: (0, 0)),
                  pl.BlockSpec((rows, 1), lambda i: (0, 0))],
        out_specs=pl.BlockSpec((rows, lt), lambda i: (0, i)),
        out_shape=jax.ShapeDtypeStruct((rows, lpp), jnp.float32),
        compiler_params=pltpu.CompilerParams(
            dimension_semantics=("parallel",)),
    )(xp, scale_r, shift_r)

    return y[:, :ltot].reshape(n, c, d, h, w)


# ----------------------------------------------------------------------------
# nn.ConvTranspose3d via phase decomposition; optional fused Sigmoid
#   - phases stacked on the matmul M dim: weight (Rd, Rh, P*Cout, Cin*Rw)
#   - H-halo fetched through a second BlockSpec (no HBM duplication)
# ----------------------------------------------------------------------------
def _convt_kernel(*refs, Qd, Th, Rd, Rh, apply_sigmoid, has_halo):
    if has_halo:
        x_ref, halo_ref, w_ref, b_ref, o_ref = refs
    else:
        x_ref, w_ref, b_ref, o_ref = refs
        halo_ref = None

    bias = b_ref[...]                                   # (P*Cout, 1) f32

    def qd_body(qd, carry):
        for qh in range(Th):                            # unrolled
            acc = None
            for td in range(Rd):                        # unrolled (<= 3)
                for th in range(Rh):                    # unrolled (<= 3)
                    row = qh + th
                    if row < Th:
                        rhs = x_ref[0, qd + td, row, :, :]        # (K, Qw)
                    else:
                        rhs = halo_ref[0, qd + td, row - Th, :, :]
                    part = jnp.dot(w_ref[td, th, :, :], rhs,
                                   preferred_element_type=jnp.float32)
                    acc = part if acc is None else acc + part
            acc = acc + bias
            if apply_sigmoid:
                acc = 1.0 / (1.0 + jnp.exp(-acc))
            o_ref[0, qd, qh, :, :] = acc
        return carry

    lax.fori_loop(0, Qd, qd_body, 0)


def _pick_th_tile(qh, qd, dp, rh, k_dim, qw, pcout,
                  budget_bytes=30 * 1024 * 1024):
    # Largest H-tile whose double-buffered in+out blocks fit the VMEM budget.
    halo = rh - 1
    for t in (qh, 64, 32, 16, 8, 4, 2, 1):
        if t > qh or t < 1:
            continue
        if halo > 0 and t % halo != 0:
            continue
        in_bytes = dp * (t + halo) * k_dim * qw * 2     # bf16 main + halo
        out_bytes = qd * t * pcout * qw * 4             # f32 output block
        if 2 * (in_bytes + out_bytes) <= budget_bytes:
            return t
    return max(halo, 1)


def conv_transpose3d_pallas(x, w, b, stride, apply_sigmoid=False):
    """x: (N,Cin,D,H,W); w: (Cin,Cout,kD,kH,kW) (PyTorch layout); b: (Cout,)."""
    n, cin, din, hin, win = x.shape
    _, cout, kd_, kh_, kw_ = w.shape
    sd, sh, sw = stride
    rd, rh, rw = -(-kd_ // sd), -(-kh_ // sh), -(-kw_ // sw)
    dout = (din - 1) * sd + kd_
    hout = (hin - 1) * sh + kh_
    wout = (win - 1) * sw + kw_
    qd, qh, qw = din + rd - 1, hin + rh - 1, win + rw - 1
    p_tot = sd * sh * sw
    k_dim = cin * rw
    pcout = p_tot * cout
    dp = din + 2 * (rd - 1)
    halo = rh - 1

    # ---- phase/tap weights: (Rd, Rh, P*Cout, Cin*Rw), bf16 (glue, tiny) ----
    wt = jnp.transpose(w, (2, 3, 4, 1, 0))              # (kd, kh, kw, cout, cin)
    zero = jnp.zeros((cout, cin), w.dtype)
    rows_td = []
    for td in range(rd):
        rows_th = []
        for th in range(rh):
            blocks = []
            for pd in range(sd):
                kd = pd + sd * (rd - 1 - td)
                for ph in range(sh):
                    kh = ph + sh * (rh - 1 - th)
                    for pw in range(sw):
                        cols = []
                        for tw in range(rw):
                            kw = pw + sw * (rw - 1 - tw)
                            if kd < kd_ and kh < kh_ and kw < kw_:
                                cols.append(wt[kd, kh, kw])
                            else:
                                cols.append(zero)
                        blocks.append(
                            jnp.stack(cols, axis=-1).reshape(cout, k_dim))
            rows_th.append(jnp.concatenate(blocks, axis=0))   # (P*Cout, K)
        rows_td.append(jnp.stack(rows_th, axis=0))
    wc = jnp.stack(rows_td, axis=0).astype(jnp.bfloat16)      # (Rd,Rh,PCout,K)

    b_packed = jnp.tile(b.astype(jnp.float32), p_tot).reshape(pcout, 1)

    # ---- tiling over H ----
    th_tile = _pick_th_tile(qh, qd, dp, rh, k_dim, qw, pcout)
    n_h = -(-qh // th_tile)
    qhp = n_h * th_tile

    # ---- input (glue): NCDHW -> (N, Dp, Hp, Cin*Rw, Qw), bf16, single copy --
    xt = jnp.transpose(x, (0, 2, 3, 1, 4))               # (N, D, H, Cin, W)
    xw = jnp.pad(xt, ((0, 0), (0, 0), (0, 0), (0, 0), (rw - 1, rw - 1)))
    xs = jnp.stack([xw[..., tw:tw + qw] for tw in range(rw)], axis=4)
    xs = xs.reshape(n, din, hin, k_dim, qw).astype(jnp.bfloat16)
    xs = jnp.pad(xs, ((0, 0), (rd - 1, rd - 1),
                      (rh - 1, halo + qhp - qh), (0, 0), (0, 0)))
    # xs shape: (n, dp, qhp + halo, k_dim, qw)

    has_halo = halo > 0
    in_specs = [pl.BlockSpec((1, dp, th_tile, k_dim, qw),
                             lambda ni, hi: (ni, 0, hi, 0, 0))]
    if has_halo:
        tpb = th_tile // halo
        in_specs.append(pl.BlockSpec((1, dp, halo, k_dim, qw),
                                     lambda ni, hi: (ni, 0, (hi + 1) * tpb,
                                                     0, 0)))
    in_specs += [pl.BlockSpec((rd, rh, pcout, k_dim),
                              lambda ni, hi: (0, 0, 0, 0)),
                 pl.BlockSpec((pcout, 1), lambda ni, hi: (0, 0))]

    kern = functools.partial(_convt_kernel, Qd=qd, Th=th_tile, Rd=rd, Rh=rh,
                             apply_sigmoid=apply_sigmoid, has_halo=has_halo)
    args = (xs, xs, wc, b_packed) if has_halo else (xs, wc, b_packed)

    out = pl.pallas_call(
        kern,
        grid=(n, n_h),
        in_specs=in_specs,
        out_specs=pl.BlockSpec((1, qd, th_tile, pcout, qw),
                               lambda ni, hi: (ni, 0, hi, 0, 0)),
        out_shape=jax.ShapeDtypeStruct((n, qd, qhp, pcout, qw), jnp.float32),
        compiler_params=pltpu.CompilerParams(
            dimension_semantics=("parallel", "parallel"),
            vmem_limit_bytes=48 * 1024 * 1024),
    )(*args)

    # ---- de-interleave stacked phases back to NCDHW (glue) ----
    out = out.reshape(n, qd, qhp, sd, sh, sw, cout, qw)
    out = jnp.transpose(out, (0, 6, 1, 3, 2, 4, 7, 5))
    out = out.reshape(n, cout, qd * sd, qhp * sh, qw * sw)
    return out[:, :, :dout, :hout, :wout]


# ----------------------------------------------------------------------------
# Decoder parameters / forward
# ----------------------------------------------------------------------------
def init_decoder_params(key, nz):
    ks = jax.random.split(key, 16)

    def rn(k, shape, scale=0.05):
        return scale * jax.random.normal(k, shape, jnp.float32)

    return {
        "w_map": rn(ks[0], (nz, 3200)), "b_map": rn(ks[1], (3200,)),
        "bn1_g": 1.0 + rn(ks[2], (40,)), "bn1_b": rn(ks[3], (40,)),
        "w1": rn(ks[4], (40, 30, 1, 5, 14)), "b1": rn(ks[5], (30,)),
        "bn2_g": 1.0 + rn(ks[6], (30,)), "bn2_b": rn(ks[7], (30,)),
        "w2": rn(ks[8], (30, 20, 5, 5, 3)), "b2": rn(ks[9], (20,)),
        "bn3_g": 1.0 + rn(ks[10], (20,)), "bn3_b": rn(ks[11], (20,)),
        "w3": rn(ks[12], (20, 10, 5, 6, 4)), "b3": rn(ks[13], (10,)),
        "w4": rn(ks[14], (10, 3, 6, 6, 6)), "b4": rn(ks[15], (3,)),
    }


def decoder_forward(x, p):
    h = linear_pallas(x, p["w_map"], p["b_map"])          # (N, 3200)
    h = h.reshape(-1, 40, 2, 5, 8)
    h = batchnorm3d_leakyrelu_pallas(h, p["bn1_g"], p["bn1_b"])
    h = conv_transpose3d_pallas(h, p["w1"], p["b1"], (1, 5, 4))
    h = batchnorm3d_leakyrelu_pallas(h, p["bn2_g"], p["bn2_b"])
    h = conv_transpose3d_pallas(h, p["w2"], p["b2"], (5, 5, 3))
    h = batchnorm3d_leakyrelu_pallas(h, p["bn3_g"], p["bn3_b"])
    h = conv_transpose3d_pallas(h, p["w3"], p["b3"], (2, 2, 2))
    h = conv_transpose3d_pallas(h, p["w4"], p["b4"], (2, 2, 2),
                                apply_sigmoid=True)
    return h                                              # (N, 3, 50, 512, 512)


# ----------------------------------------------------------------------------
# small self-checks of the building blocks vs pure-JAX references
# ----------------------------------------------------------------------------
def _ref_conv_transpose3d(x, w, b, stride):
    n, cin, d, h, wd = x.shape
    _, cout, kd_, kh_, kw_ = w.shape
    sd, sh, sw = stride
    do, ho, wo = (d - 1) * sd + kd_, (h - 1) * sh + kh_, (wd - 1) * sw + kw_
    out = (jnp.zeros((n, cout, do, ho, wo), jnp.float32)
           + b.reshape(1, cout, 1, 1, 1))
    for kd in range(kd_):
        for kh in range(kh_):
            for kw in range(kw_):
                contrib = jnp.einsum("ncdhw,co->nodhw", x, w[:, :, kd, kh, kw])
                out = out.at[:, :, kd:kd + sd * d:sd,
                             kh:kh + sh * h:sh, kw:kw + sw * wd:sw].add(contrib)
    return out


def _self_test(key):
    k1, k2, k3, k4, k5 = jax.random.split(key, 5)
    x = jax.random.normal(k1, (2, 5, 2, 3, 4), jnp.float32)

    def q(a):  # the Pallas kernel computes in bf16 (f32 accumulation)
        return a.astype(jnp.bfloat16).astype(jnp.float32)

    w = 0.1 * jax.random.normal(k2, (5, 4, 3, 4, 5), jnp.float32)
    b = 0.1 * jax.random.normal(k3, (4,), jnp.float32)
    got = conv_transpose3d_pallas(x, w, b, (2, 2, 3))
    ref = _ref_conv_transpose3d(q(x), q(w), b, (2, 2, 3))
    assert bool(jnp.allclose(got, ref, atol=2e-2, rtol=2e-2))

    w2 = 0.1 * jax.random.normal(k4, (5, 3, 2, 5, 3), jnp.float32)
    b2 = jnp.zeros((3,), jnp.float32)
    got2 = conv_transpose3d_pallas(x, w2, b2, (3, 5, 4))
    ref2 = _ref_conv_transpose3d(q(x), q(w2), b2, (3, 5, 4))
    assert bool(jnp.allclose(got2, ref2, atol=2e-2, rtol=2e-2))

    xb = jax.random.normal(k5, (2, 6, 3, 4, 5), jnp.float32)
    g = 1.0 + 0.1 * jax.random.normal(k1, (6,), jnp.float32)
    be = 0.1 * jax.random.normal(k2, (6,), jnp.float32)
    gotb = batchnorm3d_leakyrelu_pallas(xb, g, be)
    mean = xb.mean(axis=(0, 2, 3, 4), keepdims=True)
    var = ((xb - mean) ** 2).mean(axis=(0, 2, 3, 4), keepdims=True)
    yb = ((xb - mean) * lax.rsqrt(var + 1e-5) * g.reshape(1, 6, 1, 1, 1)
          + be.reshape(1, 6, 1, 1, 1))
    refb = jnp.where(yb >= 0, yb, 0.01 * yb)
    assert bool(jnp.allclose(gotb, refb, atol=1e-2, rtol=1e-2))


# ----------------------------------------------------------------------------
if __name__ == "__main__":
    key = jax.random.PRNGKey(0)
    k_test, k_par, k_in = jax.random.split(key, 3)

    _self_test(k_test)

    nz = 32
    batch = 1          # architecture fixes output at (N, 3, 50, 512, 512)
    params = init_decoder_params(k_par, nz)
    x = jax.random.normal(k_in, (batch, nz), jnp.float32)

    fwd = jax.jit(decoder_forward)
    y = jax.block_until_ready(fwd(x, params))

    assert y.shape == (batch, 3, 50, 512, 512), y.shape
    assert bool(jnp.all(jnp.isfinite(y)))
    assert bool(jnp.all((y >= 0.0) & (y <= 1.0)))   # sigmoid output range
    print("KERNEL_OK")
</pallas_src>

<mosaic_0001>
module attributes {stable_mosaic.version = 11 : i64} {
  func.func @_convt_kernel(%arg0: i32, %arg1: i32, %arg2: memref<1x4x4x10x5xbf16, #tpu.memory_space<vmem>>, %arg3: memref<1x4x1x10x5xbf16, #tpu.memory_space<vmem>>, %arg4: memref<2x2x48x10xbf16, #tpu.memory_space<vmem>>, %arg5: memref<48x1xf32, #tpu.memory_space<vmem>>, %arg6: memref<1x3x4x48x5xf32, #tpu.memory_space<vmem>>) attributes {dimension_semantics = [#tpu.dimension_semantics<parallel>, #tpu.dimension_semantics<parallel>], iteration_bounds = array<i64: 2, 1>, scalar_prefetch = 0 : i64, scratch_operands = 0 : i64, tpu.core_type = #tpu.core_type<tc>, window_params = [{transform_indices = @transform_0, window_bounds = array<i64: 1, 4, 4, 10, 5>}, {transform_indices = @transform_1, window_bounds = array<i64: 1, 4, 1, 10, 5>}, {pipeline_mode = #tpu.pipeline_mode<synchronous>, transform_indices = @transform_2, window_bounds = array<i64: 2, 2, 48, 10>}, {pipeline_mode = #tpu.pipeline_mode<synchronous>, transform_indices = @transform_3, window_bounds = array<i64: 48, 1>}, {transform_indices = @transform_4, window_bounds = array<i64: 1, 3, 4, 48, 5>}]} {
    %c0 = arith.constant 0 : index
    %c0_0 = arith.constant 0 : index
    %0 = vector.load %arg5[%c0, %c0_0] : memref<48x1xf32, #tpu.memory_space<vmem>>, vector<48x1xf32>
    %c0_i32 = arith.constant 0 : i32
    %c3_i32 = arith.constant 3 : i32
    %1 = arith.addi %c0_i32, %c3_i32 : i32
    %c1_i32 = arith.constant 1 : i32
    scf.for %arg7 = %c0_i32 to %1 step %c1_i32  : i32 {
      %c0_i32_2 = arith.constant 0 : i32
      %2 = arith.addi %arg7, %c0_i32_2 : i32
      %c0_3 = arith.constant 0 : index
      %3 = arith.index_cast %2 : i32 to index
      %c0_4 = arith.constant 0 : index
      %c0_5 = arith.constant 0 : index
      %c0_6 = arith.constant 0 : index
      %4 = vector.load %arg2[%c0_3, %3, %c0_4, %c0_5, %c0_6] : memref<1x4x4x10x5xbf16, #tpu.memory_space<vmem>>, vector<1x1x1x10x5xbf16>
      %5 = vector.shape_cast %4 : vector<1x1x1x10x5xbf16> to vector<10x5xbf16>
      %c0_7 = arith.constant 0 : index
      %c0_8 = arith.constant 0 : index
      %c0_9 = arith.constant 0 : index
      %c0_10 = arith.constant 0 : index
      %6 = vector.load %arg4[%c0_7, %c0_8, %c0_9, %c0_10] : memref<2x2x48x10xbf16, #tpu.memory_space<vmem>>, vector<1x1x48x10xbf16>
      %7 = vector.shape_cast %6 : vector<1x1x48x10xbf16> to vector<48x10xbf16>
      %cst = arith.constant dense<0.000000e+00> : vector<48x5xf32>
      %8 = tpu.matmul %7, %5, %cst {dimension_numbers = #tpu.dot_dimension_numbers<[1], [0], [0], [1], [0, 0, 1, 1], [], []>} : vector<48x10xbf16>, vector<10x5xbf16>, vector<48x5xf32> -> vector<48x5xf32>
      %c0_i32_11 = arith.constant 0 : i32
      %9 = arith.addi %arg7, %c0_i32_11 : i32
      %c0_12 = arith.constant 0 : index
      %10 = arith.index_cast %9 : i32 to index
      %c1 = arith.constant 1 : index
      %c0_13 = arith.constant 0 : index
      %c0_14 = arith.constant 0 : index
      %11 = vector.load %arg2[%c0_12, %10, %c1, %c0_13, %c0_14] : memref<1x4x4x10x5xbf16, #tpu.memory_space<vmem>>, vector<1x1x1x10x5xbf16>
      %12 = vector.shape_cast %11 : vector<1x1x1x10x5xbf16> to vector<10x5xbf16>
      %c0_15 = arith.constant 0 : index
      %c1_16 = arith.constant 1 : index
      %c0_17 = arith.constant 0 : index
      %c0_18 = arith.constant 0 : index
      %13 = vector.load %arg4[%c0_15, %c1_16, %c0_17, %c0_18] : memref<2x2x48x10xbf16, #tpu.memory_space<vmem>>, vector<1x1x48x10xbf16>
      %14 = vector.shape_cast %13 : vector<1x1x48x10xbf16> to vector<48x10xbf16>
      %cst_19 = arith.constant dense<0.000000e+00> : vector<48x5xf32>
      %15 = tpu.matmul %14, %12, %cst_19 {dimension_numbers = #tpu.dot_dimension_numbers<[1], [0], [0], [1], [0, 0, 1, 1], [], []>} : vector<48x10xbf16>, vector<10x5xbf16>, vector<48x5xf32> -> vector<48x5xf32>
      %16 = arith.addf %8, %15 : vector<48x5xf32>
      %c1_i32_20 = arith.constant 1 : i32
      %17 = arith.addi %arg7, %c1_i32_20 : i32
      %c0_21 = arith.constant 0 : index
      %18 = arith.index_cast %17 : i32 to index
      %c0_22 = arith.constant 0 : index
      %c0_23 = arith.constant 0 : index
      %c0_24 = arith.constant 0 : index
      %19 = vector.load %arg2[%c0_21, %18, %c0_22, %c0_23, %c0_24] : memref<1x4x4x10x5xbf16, #tpu.memory_space<vmem>>, vector<1x1x1x10x5xbf16>
      %20 = vector.shape_cast %19 : vector<1x1x1x10x5xbf16> to vector<10x5xbf16>
      %c1_25 = arith.constant 1 : index
      %c0_26 = arith.constant 0 : index
      %c0_27 = arith.constant 0 : index
      %c0_28 = arith.constant 0 : index
      %21 = vector.load %arg4[%c1_25, %c0_26, %c0_27, %c0_28] : memref<2x2x48x10xbf16, #tpu.memory_space<vmem>>, vector<1x1x48x10xbf16>
      %22 = vector.shape_cast %21 : vector<1x1x48x10xbf16> to vector<48x10xbf16>
      %cst_29 = arith.constant dense<0.000000e+00> : vector<48x5xf32>
      %23 = tpu.matmul %22, %20, %cst_29 {dimension_numbers = #tpu.dot_dimension_numbers<[1], [0], [0], [1], [0, 0, 1, 1], [], []>} : vector<48x10xbf16>, vector<10x5xbf16>, vector<48x5xf32> -> vector<48x5xf32>
      %24 = arith.addf %16, %23 : vector<48x5xf32>
      %c1_i32_30 = arith.constant 1 : i32
      %25 = arith.addi %arg7, %c1_i32_30 : i32
      %c0_31 = arith.constant 0 : index
      %26 = arith.index_cast %25 : i32 to index
      %c1_32 = arith.constant 1 : index
      %c0_33 = arith.constant 0 : index
      %c0_34 = arith.constant 0 : index
      %27 = vector.load %arg2[%c0_31, %26, %c1_32, %c0_33, %c0_34] : memref<1x4x4x10x5xbf16, #tpu.memory_space<vmem>>, vector<1x1x1x10x5xbf16>
      %28 = vector.shape_cast %27 : vector<1x1x1x10x5xbf16> to vector<10x5xbf16>
      %c1_35 = arith.constant 1 : index
      %c1_36 = arith.constant 1 : index
      %c0_37 = arith.constant 0 : index
      %c0_38 = arith.constant 0 : index
      %29 = vector.load %arg4[%c1_35, %c1_36, %c0_37, %c0_38] : memref<2x2x48x10xbf16, #tpu.memory_space<vmem>>, vector<1x1x48x10xbf16>
      %30 = vector.shape_cast %29 : vector<1x1x48x10xbf16> to vector<48x10xbf16>
      %cst_39 = arith.constant dense<0.000000e+00> : vector<48x5xf32>
      %31 = tpu.matmul %30, %28, %cst_39 {dimension_numbers = #tpu.dot_dimension_numbers<[1], [0], [0], [1], [0, 0, 1, 1], [], []>} : vector<48x10xbf16>, vector<10x5xbf16>, vector<48x5xf32> -> vector<48x5xf32>
      %32 = arith.addf %24, %31 : vector<48x5xf32>
      %33 = vector.broadcast %0 : vector<48x1xf32> to vector<48x5xf32>
      %34 = arith.addf %32, %33 : vector<48x5xf32>
      %c0_40 = arith.constant 0 : index
      %35 = arith.index_cast %arg7 : i32 to index
      %c0_41 = arith.constant 0 : index
      %c0_42 = arith.constant 0 : index
      %c0_43 = arith.constant 0 : index
      %36 = vector.load %arg6[%c0_40, %35, %c0_41, %c0_42, %c0_43] : memref<1x3x4x48x5xf32, #tpu.memory_space<vmem>>, vector<1x1x1x48x5xf32>
      %37 = vector.shape_cast %36 : vector<1x1x1x48x5xf32> to vector<48x5xf32>
      %38 = vector.shape_cast %34 : vector<48x5xf32> to vector<1x1x1x48x5xf32>
      tpu.vector_store %arg6[%c0_40, %35, %c0_41, %c0_42, %c0_43], %38 {strides = array<i32>} : memref<1x3x4x48x5xf32, #tpu.memory_space<vmem>>, vector<1x1x1x48x5xf32>,
      %c0_i32_44 = arith.constant 0 : i32
      %39 = arith.addi %arg7, %c0_i32_44 : i32
      %c0_45 = arith.constant 0 : index
      %40 = arith.index_cast %39 : i32 to index
      %c1_46 = arith.constant 1 : index
      %c0_47 = arith.constant 0 : index
      %c0_48 = arith.constant 0 : index
      %41 = vector.load %arg2[%c0_45, %40, %c1_46, %c0_47, %c0_48] : memref<1x4x4x10x5xbf16, #tpu.memory_space<vmem>>, vector<1x1x1x10x5xbf16>
      %42 = vector.shape_cast %41 : vector<1x1x1x10x5xbf16> to vector<10x5xbf16>
      %c0_49 = arith.constant 0 : index
      %c0_50 = arith.constant 0 : index
      %c0_51 = arith.constant 0 : index
      %c0_52 = arith.constant 0 : index
      %43 = vector.load %arg4[%c0_49, %c0_50, %c0_51, %c0_52] : memref<2x2x48x10xbf16, #tpu.memory_space<vmem>>, vector<1x1x48x10xbf16>
      %44 = vector.shape_cast %43 : vector<1x1x48x10xbf16> to vector<48x10xbf16>
      %cst_53 = arith.constant dense<0.000000e+00> : vector<48x5xf32>
      %45 = tpu.matmul %44, %42, %cst_53 {dimension_numbers = #tpu.dot_dimension_numbers<[1], [0], [0], [1], [0, 0, 1, 1], [], []>} : vector<48x10xbf16>, vector<10x5xbf16>, vector<48x5xf32> -> vector<48x5xf32>
      %c0_i32_54 = arith.constant 0 : i32
      %46 = arith.addi %arg7, %c0_i32_54 : i32
      %c0_55 = arith.constant 0 : index
      %47 = arith.index_cast %46 : i32 to index
      %c2 = arith.constant 2 : index
      %c0_56 = arith.constant 0 : index
      %c0_57 = arith.constant 0 : index
      %48 = vector.load %arg2[%c0_55, %47, %c2, %c0_56, %c0_57] : memref<1x4x4x10x5xbf16, #tpu.memory_space<vmem>>, vector<1x1x1x10x5xbf16>
      %49 = vector.shape_cast %48 : vector<1x1x1x10x5xbf16> to vector<10x5xbf16>
      %c0_58 = arith.constant 0 : index
      %c1_59 = arith.constant 1 : index
      %c0_60 = arith.constant 0 : index
      %c0_61 = arith.constant 0 : index
      %50 = vector.load %arg4[%c0_58, %c1_59, %c0_60, %c0_61] : memref<2x2x48x10xbf16, #tpu.memory_space<vmem>>, vector<1x1x48x10xbf16>
      %51 = vector.shape_cast %50 : vector<1x1x48x10xbf16> to vector<48x10xbf16>
      %cst_62 = arith.constant dense<0.000000e+00> : vector<48x5xf32>
      %52 = tpu.matmul %51, %49, %cst_62 {dimension_numbers = #tpu.dot_dimension_numbers<[1], [0], [0], [1], [0, 0, 1, 1], [], []>} : vector<48x10xbf16>, vector<10x5xbf16>, vector<48x5xf32> -> vector<48x5xf32>
      %53 = arith.addf %45, %52 : vector<48x5xf32>
      %c1_i32_63 = arith.constant 1 : i32
      %54 = arith.addi %arg7, %c1_i32_63 : i32
      %c0_64 = arith.constant 0 : index
      %55 = arith.index_cast %54 : i32 to index
      %c1_65 = arith.constant 1 : index
      %c0_66 = arith.constant 0 : index
      %c0_67 = arith.constant 0 : index
      %56 = vector.load %arg2[%c0_64, %55, %c1_65, %c0_66, %c0_67] : memref<1x4x4x10x5xbf16, #tpu.memory_space<vmem>>, vector<1x1x1x10x5xbf16>
      %57 = vector.shape_cast %56 : vector<1x1x1x10x5xbf16> to vector<10x5xbf16>
      %c1_68 = arith.constant 1 : index
      %c0_69 = arith.constant 0 : index
      %c0_70 = arith.constant 0 : index
      %c0_71 = arith.constant 0 : index
      %58 = vector.load %arg4[%c1_68, %c0_69, %c0_70, %c0_71] : memref<2x2x48x10xbf16, #tpu.memory_space<vmem>>, vector<1x1x48x10xbf16>
      %59 = vector.shape_cast %58 : vector<1x1x48x10xbf16> to vector<48x10xbf16>
      %cst_72 = arith.constant dense<0.000000e+00> : vector<48x5xf32>
      %60 = tpu.matmul %59, %57, %cst_72 {dimension_numbers = #tpu.dot_dimension_numbers<[1], [0], [0], [1], [0, 0, 1, 1], [], []>} : vector<48x10xbf16>, vector<10x5xbf16>, vector<48x5xf32> -> vector<48x5xf32>
      %61 = arith.addf %53, %60 : vector<48x5xf32>
      %c1_i32_73 = arith.constant 1 : i32
      %62 = arith.addi %arg7, %c1_i32_73 : i32
      %c0_74 = arith.constant 0 : index
      %63 = arith.index_cast %62 : i32 to index
      %c2_75 = arith.constant 2 : index
      %c0_76 = arith.constant 0 : index
      %c0_77 = arith.constant 0 : index
      %64 = vector.load %arg2[%c0_74, %63, %c2_75, %c0_76, %c0_77] : memref<1x4x4x10x5xbf16, #tpu.memory_space<vmem>>, vector<1x1x1x10x5xbf16>
      %65 = vector.shape_cast %64 : vector<1x1x1x10x5xbf16> to vector<10x5xbf16>
      %c1_78 = arith.constant 1 : index
      %c1_79 = arith.constant 1 : index
      %c0_80 = arith.constant 0 : index
      %c0_81 = arith.constant 0 : index
      %66 = vector.load %arg4[%c1_78, %c1_79, %c0_80, %c0_81] : memref<2x2x48x10xbf16, #tpu.memory_space<vmem>>, vector<1x1x48x10xbf16>
      %67 = vector.shape_cast %66 : vector<1x1x48x10xbf16> to vector<48x10xbf16>
      %cst_82 = arith.constant dense<0.000000e+00> : vector<48x5xf32>
      %68 = tpu.matmul %67, %65, %cst_82 {dimension_numbers = #tpu.dot_dimension_numbers<[1], [0], [0], [1], [0, 0, 1, 1], [], []>} : vector<48x10xbf16>, vector<10x5xbf16>, vector<48x5xf32> -> vector<48x5xf32>
      %69 = arith.addf %61, %68 : vector<48x5xf32>
      %70 = vector.broadcast %0 : vector<48x1xf32> to vector<48x5xf32>
      %71 = arith.addf %69, %70 : vector<48x5xf32>
      %c0_83 = arith.constant 0 : index
      %72 = arith.index_cast %arg7 : i32 to index
      %c1_84 = arith.constant 1 : index
      %c0_85 = arith.constant 0 : index
      %c0_86 = arith.constant 0 : index
      %73 = vector.load %arg6[%c0_83, %72, %c1_84, %c0_85, %c0_86] : memref<1x3x4x48x5xf32, #tpu.memory_space<vmem>>, vector<1x1x1x48x5xf32>
      %74 = vector.shape_cast %73 : vector<1x1x1x48x5xf32> to vector<48x5xf32>
      %75 = vector.shape_cast %71 : vector<48x5xf32> to vector<1x1x1x48x5xf32>
      tpu.vector_store %arg6[%c0_83, %72, %c1_84, %c0_85, %c0_86], %75 {strides = array<i32>} : memref<1x3x4x48x5xf32, #tpu.memory_space<vmem>>, vector<1x1x1x48x5xf32>,
      %c0_i32_87 = arith.constant 0 : i32
      %76 = arith.addi %arg7, %c0_i32_87 : i32
      %c0_88 = arith.constant 0 : index
      %77 = arith.index_cast %76 : i32 to index
      %c2_89 = arith.constant 2 : index
      %c0_90 = arith.constant 0 : index
      %c0_91 = arith.constant 0 : index
      %78 = vector.load %arg2[%c0_88, %77, %c2_89, %c0_90, %c0_91] : memref<1x4x4x10x5xbf16, #tpu.memory_space<vmem>>, vector<1x1x1x10x5xbf16>
      %79 = vector.shape_cast %78 : vector<1x1x1x10x5xbf16> to vector<10x5xbf16>
      %c0_92 = arith.constant 0 : index
      %c0_93 = arith.constant 0 : index
      %c0_94 = arith.constant 0 : index
      %c0_95 = arith.constant 0 : index
      %80 = vector.load %arg4[%c0_92, %c0_93, %c0_94, %c0_95] : memref<2x2x48x10xbf16, #tpu.memory_space<vmem>>, vector<1x1x48x10xbf16>
      %81 = vector.shape_cast %80 : vector<1x1x48x10xbf16> to vector<48x10xbf16>
      %cst_96 = arith.constant dense<0.000000e+00> : vector<48x5xf32>
      %82 = tpu.matmul %81, %79, %cst_96 {dimension_numbers = #tpu.dot_dimension_numbers<[1], [0], [0], [1], [0, 0, 1, 1], [], []>} : vector<48x10xbf16>, vector<10x5xbf16>, vector<48x5xf32> -> vector<48x5xf32>
      %c0_i32_97 = arith.constant 0 : i32
      %83 = arith.addi %arg7, %c0_i32_97 : i32
      %c0_98 = arith.constant 0 : index
      %84 = arith.index_cast %83 : i32 to index
      %c3 = arith.constant 3 : index
      %c0_99 = arith.constant 0 : index
      %c0_100 = arith.constant 0 : index
      %85 = vector.load %arg2[%c0_98, %84, %c3, %c0_99, %c0_100] : memref<1x4x4x10x5xbf16, #tpu.memory_space<vmem>>, vector<1x1x1x10x5xbf16>
      %86 = vector.shape_cast %85 : vector<1x1x1x10x5xbf16> to vector<10x5xbf16>
      %c0_101 = arith.constant 0 : index
      %c1_102 = arith.constant 1 : index
      %c0_103 = arith.constant 0 : index
      %c0_104 = arith.constant 0 : index
      %87 = vector.load %arg4[%c0_101, %c1_102, %c0_103, %c0_104] : memref<2x2x48x10xbf16, #tpu.memory_space<vmem>>, vector<1x1x48x10xbf16>
      %88 = vector.shape_cast %87 : vector<1x1x48x10xbf16> to vector<48x10xbf16>
      %cst_105 = arith.constant dense<0.000000e+00> : vector<48x5xf32>
      %89 = tpu.matmul %88, %86, %cst_105 {dimension_numbers = #tpu.dot_dimension_numbers<[1], [0], [0], [1], [0, 0, 1, 1], [], []>} : vector<48x10xbf16>, vector<10x5xbf16>, vector<48x5xf32> -> vector<48x5xf32>
      %90 = arith.addf %82, %89 : vector<48x5xf32>
      %c1_i32_106 = arith.constant 1 : i32
      %91 = arith.addi %arg7, %c1_i32_106 : i32
      %c0_107 = arith.constant 0 : index
      %92 = arith.index_cast %91 : i32 to index
      %c2_108 = arith.constant 2 : index
      %c0_109 = arith.constant 0 : index
      %c0_110 = arith.constant 0 : index
      %93 = vector.load %arg2[%c0_107, %92, %c2_108, %c0_109, %c0_110] : memref<1x4x4x10x5xbf16, #tpu.memory_space<vmem>>, vector<1x1x1x10x5xbf16>
      %94 = vector.shape_cast %93 : vector<1x1x1x10x5xbf16> to vector<10x5xbf16>
      %c1_111 = arith.constant 1 : index
      %c0_112 = arith.constant 0 : index
      %c0_113 = arith.constant 0 : index
      %c0_114 = arith.constant 0 : index
      %95 = vector.load %arg4[%c1_111, %c0_112, %c0_113, %c0_114] : memref<2x2x48x10xbf16, #tpu.memory_space<vmem>>, vector<1x1x48x10xbf16>
      %96 = vector.shape_cast %95 : vector<1x1x48x10xbf16> to vector<48x10xbf16>
      %cst_115 = arith.constant dense<0.000000e+00> : vector<48x5xf32>
      %97 = tpu.matmul %96, %94, %cst_115 {dimension_numbers = #tpu.dot_dimension_numbers<[1], [0], [0], [1], [0, 0, 1, 1], [], []>} : vector<48x10xbf16>, vector<10x5xbf16>, vector<48x5xf32> -> vector<48x5xf32>
      %98 = arith.addf %90, %97 : vector<48x5xf32>
      %c1_i32_116 = arith.constant 1 : i32
      %99 = arith.addi %arg7, %c1_i32_116 : i32
      %c0_117 = arith.constant 0 : index
      %100 = arith.index_cast %99 : i32 to index
      %c3_118 = arith.constant 3 : index
      %c0_119 = arith.constant 0 : index
      %c0_120 = arith.constant 0 : index
      %101 = vector.load %arg2[%c0_117, %100, %c3_118, %c0_119, %c0_120] : memref<1x4x4x10x5xbf16, #tpu.memory_space<vmem>>, vector<1x1x1x10x5xbf16>
      %102 = vector.shape_cast %101 : vector<1x1x1x10x5xbf16> to vector<10x5xbf16>
      %c1_121 = arith.constant 1 : index
      %c1_122 = arith.constant 1 : index
      %c0_123 = arith.constant 0 : index
      %c0_124 = arith.constant 0 : index
      %103 = vector.load %arg4[%c1_121, %c1_122, %c0_123, %c0_124] : memref<2x2x48x10xbf16, #tpu.memory_space<vmem>>, vector<1x1x48x10xbf16>
      %104 = vector.shape_cast %103 : vector<1x1x48x10xbf16> to vector<48x10xbf16>
      %cst_125 = arith.constant dense<0.000000e+00> : vector<48x5xf32>
      %105 = tpu.matmul %104, %102, %cst_125 {dimension_numbers = #tpu.dot_dimension_numbers<[1], [0], [0], [1], [0, 0, 1, 1], [], []>} : vector<48x10xbf16>, vector<10x5xbf16>, vector<48x5xf32> -> vector<48x5xf32>
      %106 = arith.addf %98, %105 : vector<48x5xf32>
      %107 = vector.broadcast %0 : vector<48x1xf32> to vector<48x5xf32>
      %108 = arith.addf %106, %107 : vector<48x5xf32>
      %c0_126 = arith.constant 0 : index
      %109 = arith.index_cast %arg7 : i32 to index
      %c2_127 = arith.constant 2 : index
      %c0_128 = arith.constant 0 : index
      %c0_129 = arith.constant 0 : index
      %110 = vector.load %arg6[%c0_126, %109, %c2_127, %c0_128, %c0_129] : memref<1x3x4x48x5xf32, #tpu.memory_space<vmem>>, vector<1x1x1x48x5xf32>
      %111 = vector.shape_cast %110 : vector<1x1x1x48x5xf32> to vector<48x5xf32>
      %112 = vector.shape_cast %108 : vector<48x5xf32> to vector<1x1x1x48x5xf32>
      tpu.vector_store %arg6[%c0_126, %109, %c2_127, %c0_128, %c0_129], %112 {strides = array<i32>} : memref<1x3x4x48x5xf32, #tpu.memory_space<vmem>>, vector<1x1x1x48x5xf32>,
      %c0_i32_130 = arith.constant 0 : i32
      %113 = arith.addi %arg7, %c0_i32_130 : i32
      %c0_131 = arith.constant 0 : index
      %114 = arith.index_cast %113 : i32 to index
      %c3_132 = arith.constant 3 : index
      %c0_133 = arith.constant 0 : index
      %c0_134 = arith.constant 0 : index
      %115 = vector.load %arg2[%c0_131, %114, %c3_132, %c0_133, %c0_134] : memref<1x4x4x10x5xbf16, #tpu.memory_space<vmem>>, vector<1x1x1x10x5xbf16>
      %116 = vector.shape_cast %115 : vector<1x1x1x10x5xbf16> to vector<10x5xbf16>
      %c0_135 = arith.constant 0 : index
      %c0_136 = arith.constant 0 : index
      %c0_137 = arith.constant 0 : index
      %c0_138 = arith.constant 0 : index
      %117 = vector.load %arg4[%c0_135, %c0_136, %c0_137, %c0_138] : memref<2x2x48x10xbf16, #tpu.memory_space<vmem>>, vector<1x1x48x10xbf16>
      %118 = vector.shape_cast %117 : vector<1x1x48x10xbf16> to vector<48x10xbf16>
      %cst_139 = arith.constant dense<0.000000e+00> : vector<48x5xf32>
      %119 = tpu.matmul %118, %116, %cst_139 {dimension_numbers = #tpu.dot_dimension_numbers<[1], [0], [0], [1], [0, 0, 1, 1], [], []>} : vector<48x10xbf16>, vector<10x5xbf16>, vector<48x5xf32> -> vector<48x5xf32>
      %c0_i32_140 = arith.constant 0 : i32
      %120 = arith.addi %arg7, %c0_i32_140 : i32
      %c0_141 = arith.constant 0 : index
      %121 = arith.index_cast %120 : i32 to index
      %c0_142 = arith.constant 0 : index
      %c0_143 = arith.constant 0 : index
      %c0_144 = arith.constant 0 : index
      %122 = vector.load %arg3[%c0_141, %121, %c0_142, %c0_143, %c0_144] : memref<1x4x1x10x5xbf16, #tpu.memory_space<vmem>>, vector<1x1x1x10x5xbf16>
      %123 = vector.shape_cast %122 : vector<1x1x1x10x5xbf16> to vector<10x5xbf16>
      %c0_145 = arith.constant 0 : index
      %c1_146 = arith.constant 1 : index
      %c0_147 = arith.constant 0 : index
      %c0_148 = arith.constant 0 : index
      %124 = vector.load %arg4[%c0_145, %c1_146, %c0_147, %c0_148] : memref<2x2x48x10xbf16, #tpu.memory_space<vmem>>, vector<1x1x48x10xbf16>
      %125 = vector.shape_cast %124 : vector<1x1x48x10xbf16> to vector<48x10xbf16>
      %cst_149 = arith.constant dense<0.000000e+00> : vector<48x5xf32>
      %126 = tpu.matmul %125, %123, %cst_149 {dimension_numbers = #tpu.dot_dimension_numbers<[1], [0], [0], [1], [0, 0, 1, 1], [], []>} : vector<48x10xbf16>, vector<10x5xbf16>, vector<48x5xf32> -> vector<48x5xf32>
      %127 = arith.addf %119, %126 : vector<48x5xf32>
      %c1_i32_150 = arith.constant 1 : i32
      %128 = arith.addi %arg7, %c1_i32_150 : i32
      %c0_151 = arith.constant 0 : index
      %129 = arith.index_cast %128 : i32 to index
      %c3_152 = arith.constant 3 : index
      %c0_153 = arith.constant 0 : index
      %c0_154 = arith.constant 0 : index
      %130 = vector.load %arg2[%c0_151, %129, %c3_152, %c0_153, %c0_154] : memref<1x4x4x10x5xbf16, #tpu.memory_space<vmem>>, vector<1x1x1x10x5xbf16>
      %131 = vector.shape_cast %130 : vector<1x1x1x10x5xbf16> to vector<10x5xbf16>
      %c1_155 = arith.constant 1 : index
      %c0_156 = arith.constant 0 : index
      %c0_157 = arith.constant 0 : index
      %c0_158 = arith.constant 0 : index
      %132 = vector.load %arg4[%c1_155, %c0_156, %c0_157, %c0_158] : memref<2x2x48x10xbf16, #tpu.memory_space<vmem>>, vector<1x1x48x10xbf16>
      %133 = vector.shape_cast %132 : vector<1x1x48x10xbf16> to vector<48x10xbf16>
      %cst_159 = arith.constant dense<0.000000e+00> : vector<48x5xf32>
      %134 = tpu.matmul %133, %131, %cst_159 {dimension_numbers = #tpu.dot_dimension_numbers<[1], [0], [0], [1], [0, 0, 1, 1], [], []>} : vector<48x10xbf16>, vector<10x5xbf16>, vector<48x5xf32> -> vector<48x5xf32>
      %135 = arith.addf %127, %134 : vector<48x5xf32>
      %c1_i32_160 = arith.constant 1 : i32
      %136 = arith.addi %arg7, %c1_i32_160 : i32
      %c0_161 = arith.constant 0 : index
      %137 = arith.index_cast %136 : i32 to index
      %c0_162 = arith.constant 0 : index
      %c0_163 = arith.constant 0 : index
      %c0_164 = arith.constant 0 : index
      %138 = vector.load %arg3[%c0_161, %137, %c0_162, %c0_163, %c0_164] : memref<1x4x1x10x5xbf16, #tpu.memory_space<vmem>>, vector<1x1x1x10x5xbf16>
      %139 = vector.shape_cast %138 : vector<1x1x1x10x5xbf16> to vector<10x5xbf16>
      %c1_165 = arith.constant 1 : index
      %c1_166 = arith.constant 1 : index
      %c0_167 = arith.constant 0 : index
      %c0_168 = arith.constant 0 : index
      %140 = vector.load %arg4[%c1_165, %c1_166, %c0_167, %c0_168] : memref<2x2x48x10xbf16, #tpu.memory_space<vmem>>, vector<1x1x48x10xbf16>
      %141 = vector.shape_cast %140 : vector<1x1x48x10xbf16> to vector<48x10xbf16>
      %cst_169 = arith.constant dense<0.000000e+00> : vector<48x5xf32>
      %142 = tpu.matmul %141, %139, %cst_169 {dimension_numbers = #tpu.dot_dimension_numbers<[1], [0], [0], [1], [0, 0, 1, 1], [], []>} : vector<48x10xbf16>, vector<10x5xbf16>, vector<48x5xf32> -> vector<48x5xf32>
      %143 = arith.addf %135, %142 : vector<48x5xf32>
      %144 = vector.broadcast %0 : vector<48x1xf32> to vector<48x5xf32>
      %145 = arith.addf %143, %144 : vector<48x5xf32>
      %c0_170 = arith.constant 0 : index
      %146 = arith.index_cast %arg7 : i32 to index
      %c3_171 = arith.constant 3 : index
      %c0_172 = arith.constant 0 : index
      %c0_173 = arith.constant 0 : index
      %147 = vector.load %arg6[%c0_170, %146, %c3_171, %c0_172, %c0_173] : memref<1x3x4x48x5xf32, #tpu.memory_space<vmem>>, vector<1x1x1x48x5xf32>
      %148 = vector.shape_cast %147 : vector<1x1x1x48x5xf32> to vector<48x5xf32>
      %149 = vector.shape_cast %145 : vector<48x5xf32> to vector<1x1x1x48x5xf32>
      tpu.vector_store %arg6[%c0_170, %146, %c3_171, %c0_172, %c0_173], %149 {strides = array<i32>} : memref<1x3x4x48x5xf32, #tpu.memory_space<vmem>>, vector<1x1x1x48x5xf32>,
    }
    %c3_i32_1 = arith.constant 3 : i32
    return
  }
  func.func @transform_0(%arg0: i32, %arg1: i32) -> (i32, i32, i32, i32, i32) {
    %c0_i32 = arith.constant 0 : i32
    %c0_i32_0 = arith.constant 0 : i32
    %c0_i32_1 = arith.constant 0 : i32
    %c0_i32_2 = arith.constant 0 : i32
    return %arg0, %c0_i32, %arg1, %c0_i32_0, %c0_i32_1 : i32, i32, i32, i32, i32
  }
  func.func @transform_1(%arg0: i32, %arg1: i32) -> (i32, i32, i32, i32, i32) {
    %c1_i32 = arith.constant 1 : i32
    %0 = arith.addi %arg1, %c1_i32 : i32
    %c4_i32 = arith.constant 4 : i32
    %1 = arith.muli %0, %c4_i32 : i32
    %c0_i32 = arith.constant 0 : i32
    %c0_i32_0 = arith.constant 0 : i32
    %c0_i32_1 = arith.constant 0 : i32
    %c0_i32_2 = arith.constant 0 : i32
    return %arg0, %c0_i32, %1, %c0_i32_0, %c0_i32_1 : i32, i32, i32, i32, i32
  }
  func.func @transform_2(%arg0: i32, %arg1: i32) -> (i32, i32, i32, i32) {
    %c0_i32 = arith.constant 0 : i32
    %c0_i32_0 = arith.constant 0 : i32
    %c0_i32_1 = arith.constant 0 : i32
    %c0_i32_2 = arith.constant 0 : i32
    %c0_i32_3 = arith.constant 0 : i32
    return %c0_i32, %c0_i32_0, %c0_i32_1, %c0_i32_2 : i32, i32, i32, i32
  }
  func.func @transform_3(%arg0: i32, %arg1: i32) -> (i32, i32) {
    %c0_i32 = arith.constant 0 : i32
    %c0_i32_0 = arith.constant 0 : i32
    %c0_i32_1 = arith.constant 0 : i32
    return %c0_i32, %c0_i32_0 : i32, i32
  }
  func.func @transform_4(%arg0: i32, %arg1: i32) -> (i32, i32, i32, i32, i32) {
    %c0_i32 = arith.constant 0 : i32
    %c0_i32_0 = arith.constant 0 : i32
    %c0_i32_1 = arith.constant 0 : i32
    %c0_i32_2 = arith.constant 0 : i32
    return %arg0, %c0_i32, %arg1, %c0_i32_0, %c0_i32_1 : i32, i32, i32, i32, i32
  }
}

</mosaic_0001>

<llo_original>
// kernel: tpu_custom_call.1
$region0: #{tpu_custom_call.1}
  #allocation0 [shape = 'u32[]', space=smem, size = 0x4, offset = 0x4, fixed_abs, tag = 'smem constant byte address 0x4 - core index']
  #allocation1 [shape = 'u32[144,128]{1,0:T(1,128)}', space=vmem, size = 0x12000, scoped, tag = 'internal scratch']
  %s0 = inlined_call_operand.vmem [shape: bf16[2,4,5,10,5], index: 0, kind: input, shape index: {}]
  %s1 = inlined_call_operand.vmem [shape: bf16[2,4,5,10,5], index: 1, kind: input, shape index: {}]
  %s2 = inlined_call_operand.vmem [shape: bf16[2,2,48,10], index: 2, kind: input, shape index: {}]
  %s3 = inlined_call_operand.vmem [shape: f32[48,1], index: 3, kind: input, shape index: {}]
  %s4 = inlined_call_operand.vmem [shape: f32[2,3,4,48,5], index: 4, kind: output, shape index: {}]
  %s5 = sld [smem:[#allocation0]]
  $region159: #{tpu_custom_call.1} parent=0
    _
  %s7 = ssub.s32 1, %s5
  %s8 = scalar_select 0, %s7, %s5
  $region1: #{tpu_custom_call.1} parent=0
    #allocation2 [shape = 'u8[131072]{0}', space=vmem, size = 0x20000, scoped, tag = 'input window, operand 0']
    #allocation3 [shape = 'u8[32768]{0}', space=vmem, size = 0x8000, scoped, tag = 'input window, operand 1']
    loop: start=0, step=1, limit=4
    $region2: #{tpu_custom_call.1} parent=1 // loop_pre_header
      _
    $region3: #{tpu_custom_call.1} parent=1 // loop_header
      %s10 = sphi 0, %s14
      %p11 = scmp.ge.s32.totalorder %s10, 4
      %s17 = sphi 0, %s29
      %s18 = sphi 0, %s25
      %s19 = sphi 0, %s17
      %s20 = sphi 0, %s18
      %s21 = sphi 0, %s19
      %s22 = sphi 0, %s20
      %s34 = sphi 0, %s36
      %s37 = sphi 0, %s34
      %s38 = sphi 0, %s37
      %s54 = sphi 0, %s38
      %s66 = sphi 0, %s68
      %s69 = sphi 0, %s66
      %s70 = sphi 0, %s69
      %s86 = sphi 0, %s70
      %s90 = sphi 0, %s90
      %s92 = sphi 0, %s90
      %s93 = sphi 0, %s92
      %s107 = sphi 0, %s93
      %s111 = sphi 0, %s111
      %s113 = sphi 0, %s111
      %s114 = sphi 0, %s113
      %s128 = sphi 0, %s114
      %s136 = sphi 0, %s138
      %s139 = sphi 0, %s136
      %s140 = sphi 0, %s139
      %s156 = sphi 0, %s140
    $region4: #{tpu_custom_call.1} parent=1 // loop_header_branch
      %13 = sbr.rel (%p11) target = $region8
    $region5: #{tpu_custom_call.1} parent=1 // loop_body
      %s15 = ssub.s32 %s10, 1
      %s16 = ssub.s32 %s10, 2
      %s23 = sadd.s32 1, %s18
      %p24 = scmp.ge.s32.totalorder %s23, 1
      %s25 = scalar_select %p24, 0, %s23
      %s26 = sadd.s32 1, %s17
      %s27 = scalar_select %p24, %s26, %s17
      %p28 = scmp.ge.s32.totalorder %s27, 2
      %s29 = scalar_select %p28, 0, %s27
      %s30 = ssub.s32 %s17, %s29
      %s31 = ssub.s32 %s18, %s25
      %s32 = sor.u32 %s30, %s31
      %p33 = scmp.eq.s32.totalorder %s32, 0
      %s35 = sadd.s32 %s34, 1
      %s36 = scalar_select %p33, %s34, %s35
      %p39 = pneg %p33
      %p40 = scmp.eq.s32.totalorder %s10, 1
      %p41 = por %p39, %p40
      %p42 = scmp.ne.s32.totalorder %s34, %s37
      %p43 = scmp.eq.s32.totalorder %s10, 0
      %p44 = por %p42, %p43
      %p45 = scmp.ne.s32.totalorder %s34, %s37
      %p46 = scmp.eq.s32.totalorder %s15, 1
      %p47 = por %p45, %p46
      %p48 = scmp.ne.s32.totalorder %s37, %s38
      %p49 = scmp.eq.s32.totalorder %s15, 0
      %p50 = por %p48, %p49
      %p51 = scmp.ne.s32.totalorder %s37, %s38
      %p52 = scmp.eq.s32.totalorder %s16, 1
      %p53 = por %p51, %p52
      %p55 = scmp.ne.s32.totalorder %s38, %s54
      %p56 = scmp.eq.s32.totalorder %s16, 0
      %p57 = por %p55, %p56
      %s58 = sadd.s32 %s18, 1
      %s59 = smul.u32 %s58, 4
      %s60 = sadd.s32 %s25, 1
      %s61 = smul.u32 %s60, 4
      %s62 = ssub.s32 %s17, %s29
      %s63 = ssub.s32 %s59, %s61
      %s64 = sor.u32 %s62, %s63
      %p65 = scmp.eq.s32.totalorder %s64, 0
      %s67 = sadd.s32 %s66, 1
      %s68 = scalar_select %p65, %s66, %s67
      %p71 = pneg %p65
      %p72 = scmp.eq.s32.totalorder %s10, 1
      %p73 = por %p71, %p72
      %p74 = scmp.ne.s32.totalorder %s66, %s69
      %p75 = scmp.eq.s32.totalorder %s10, 0
      %p76 = por %p74, %p75
      %p77 = scmp.ne.s32.totalorder %s66, %s69
      %p78 = scmp.eq.s32.totalorder %s15, 1
      %p79 = por %p77, %p78
      %p80 = scmp.ne.s32.totalorder %s69, %s70
      %p81 = scmp.eq.s32.totalorder %s15, 0
      %p82 = por %p80, %p81
      %p83 = scmp.ne.s32.totalorder %s69, %s70
      %p84 = scmp.eq.s32.totalorder %s16, 1
      %p85 = por %p83, %p84
      %p87 = scmp.ne.s32.totalorder %s70, %s86
      %p88 = scmp.eq.s32.totalorder %s16, 0
      %p89 = por %p87, %p88
      %s91 = sadd.s32 %s90, 1
      %p94 = scmp.eq.s32.totalorder %s10, 1
      %p95 = scmp.ne.s32.totalorder %s90, %s92
      %p96 = scmp.eq.s32.totalorder %s10, 0
      %p97 = por %p95, %p96
      %p98 = scmp.ne.s32.totalorder %s90, %s92
      %p99 = scmp.eq.s32.totalorder %s15, 1
      %p100 = por %p98, %p99
      %p101 = scmp.ne.s32.totalorder %s92, %s93
      %p102 = scmp.eq.s32.totalorder %s15, 0
      %p103 = por %p101, %p102
      %p104 = scmp.ne.s32.totalorder %s92, %s93
      %p105 = scmp.eq.s32.totalorder %s16, 1
      %p106 = por %p104, %p105
      %p108 = scmp.ne.s32.totalorder %s93, %s107
      %p109 = scmp.eq.s32.totalorder %s16, 0
      %p110 = por %p108, %p109
      %s112 = sadd.s32 %s111, 1
      %p115 = scmp.eq.s32.totalorder %s10, 1
      %p116 = scmp.ne.s32.totalorder %s111, %s113
      %p117 = scmp.eq.s32.totalorder %s10, 0
      %p118 = por %p116, %p117
      %p119 = scmp.ne.s32.totalorder %s111, %s113
      %p120 = scmp.eq.s32.totalorder %s15, 1
      %p121 = por %p119, %p120
      %p122 = scmp.ne.s32.totalorder %s113, %s114
      %p123 = scmp.eq.s32.totalorder %s15, 0
      %p124 = por %p122, %p123
      %p125 = scmp.ne.s32.totalorder %s113, %s114
      %p126 = scmp.eq.s32.totalorder %s16, 1
      %p127 = por %p125, %p126
      %p129 = scmp.ne.s32.totalorder %s114, %s128
      %p130 = scmp.eq.s32.totalorder %s16, 0
      %p131 = por %p129, %p130
      %s132 = ssub.s32 %s17, %s29
      %s133 = ssub.s32 %s18, %s25
      %s134 = sor.u32 %s132, %s133
      %p135 = scmp.eq.s32.totalorder %s134, 0
      %s137 = sadd.s32 %s136, 1
      %s138 = scalar_select %p135, %s136, %s137
      %p141 = pneg %p135
      %p142 = scmp.eq.s32.totalorder %s10, 1
      %p143 = por %p141, %p142
      %p144 = scmp.ne.s32.totalorder %s136, %s139
      %p145 = scmp.eq.s32.totalorder %s10, 0
      %p146 = por %p144, %p145
      %p147 = scmp.ne.s32.totalorder %s136, %s139
      %p148 = scmp.eq.s32.totalorder %s15, 1
      %p149 = por %p147, %p148
      %p150 = scmp.ne.s32.totalorder %s139, %s140
      %p151 = scmp.eq.s32.totalorder %s15, 0
      %p152 = por %p150, %p151
      %p153 = scmp.ne.s32.totalorder %s139, %s140
      %p154 = scmp.eq.s32.totalorder %s16, 1
      %p155 = por %p153, %p154
      %p157 = scmp.ne.s32.totalorder %s140, %s156
      %p158 = scmp.eq.s32.totalorder %s16, 0
      %p159 = por %p157, %p158
      %p160 = scmp.le.s32.totalorder 1, %s10
      %p161 = scmp.lt.s32.totalorder %s10, 3
      %p162 = pnand %p160, %p161
      %p163 = pneg %p162
      // Predicated region
      $region9: #{tpu_custom_call.1} parent=5 // pred_check
        _
      $region10: #{tpu_custom_call.1} parent=5 // pred_check_branch
        %165 = sbr.rel (%p162) target = $region12
      $region11: #{tpu_custom_call.1} parent=5 // pred_region
        %s166 = ssub.s32 %s10, 1
        // Predicated region
        $region13: #{tpu_custom_call.1} parent=11 // pred_check
          %p167 = pneg %p103
        $region14: #{tpu_custom_call.1} parent=11 // pred_check_branch
          %169 = sbr.rel (%p167) target = $region16
        $region15: #{tpu_custom_call.1} parent=11 // pred_region
          _
        $region16: #{tpu_custom_call.1} parent=11 // pred_fallthru
          _
        // Predicated region
        $region17: #{tpu_custom_call.1} parent=11 // pred_check
          %p170 = pneg %p124
        $region18: #{tpu_custom_call.1} parent=11 // pred_check_branch
          %172 = sbr.rel (%p170) target = $region20
        $region19: #{tpu_custom_call.1} parent=11 // pred_region
          _
        $region20: #{tpu_custom_call.1} parent=11 // pred_fallthru
          _
      $region12: #{tpu_custom_call.1} parent=5 // pred_fallthru
        _
      %p173 = scmp.lt.s32.totalorder %s10, 2
      // Predicated region
      $region21: #{tpu_custom_call.1} parent=5 // pred_check
        %p174 = pneg %p173
      $region22: #{tpu_custom_call.1} parent=5 // pred_check_branch
        %176 = sbr.rel (%p174) target = $region24
      $region23: #{tpu_custom_call.1} parent=5 // pred_region
        // Predicated region
        $region25: #{tpu_custom_call.1} parent=23 // pred_check
          %p177 = pneg %p44
        $region26: #{tpu_custom_call.1} parent=23 // pred_check_branch
          %179 = sbr.rel (%p177) target = $region28
        $region27: #{tpu_custom_call.1} parent=23 // pred_region
          %s180 = sand.u32 %s34, 1
          %s181 = sand.u32 %s34, 1
          %s182 = smul.addr %s181, 128
          %s183 = scalar_lea.vmem [#allocation2], %s182
          %s184 = smul.u32 4, %s18
          %s185 = ssub.s32 5, %s184
          %p186 = scmp.lt.s32.totalorder %s185, 4
          %s187 = scalar_select %p186, %s185, 4
          %s188 = smul.u32 256, %s187
          %s189 = smul.u32 %s188, 2
          %p190 = scmp.ne.s32.totalorder 0, %s189
          %s191 = smul.addr %s184, 2
          %s192 = smul.addr %s17, 40
          %s193 = sadd.s32 %s191, %s192
          %s194 = smul.addr %s193, 4
          %s195 = scalar_lea.vmem %s0, %s194
          %s196 = smul.u32 %s187, 2
          // Predicated region
          $region29: #{tpu_custom_call.1} parent=27 // pred_check
            %p197 = pneg %p190
          $region30: #{tpu_custom_call.1} parent=27 // pred_check_branch
            %199 = sbr.rel (%p197) target = $region32
          $region31: #{tpu_custom_call.1} parent=27 // pred_region
            // Predicated region
            $region33: #{tpu_custom_call.1} parent=31 // pred_check
              _
            $region34: #{tpu_custom_call.1} parent=31 // pred_check_branch
              %201 = sbr.rel target = $region36
            $region35: #{tpu_custom_call.1} parent=31 // pred_region
              // Predicated region
              $region55: #{tpu_custom_call.1} parent=35 // pred_check
                _
              $region56: #{tpu_custom_call.1} parent=35 // pred_check_branch
                %318 = sbr.rel (0) target = $region58
              $region57: #{tpu_custom_call.1} parent=35 // pred_region
                %s319 = sshrl.u32 %s196, 3
                // While loop
                $region59: #{tpu_custom_call.1} parent=57 // loop_pre_header
                  _
                $region60: #{tpu_custom_call.1} parent=57 // loop_header
                  %s321 = sphi 0, %s323
                  %p322 = scmp.ge.s32.totalorder %s321, %s319
                  %s326 = sphi 0, %s331
                  %s327 = sphi %s195, %s334
                  %s328 = sphi %s183, %s335
                $region61: #{tpu_custom_call.1} parent=57 // loop_header_branch
                  %325 = sbr.rel (%p322) target = $region65
                $region62: #{tpu_custom_call.1} parent=57 // loop_body
                  %s329 = sadd.s32 1, %s326
                  %p330 = scmp.ge.s32.totalorder %s329, %s319
                  %s331 = scalar_select %p330, 0, %s329
                  %s332 = smul.u32 %s331, 32
                  %s333 = smul.u32 %s331, 32
                  %s334 = scalar_lea.vmem %s195, %s332
                  %s335 = scalar_lea.vmem %s183, %s333 [#allocation2]
                $region63: #{tpu_custom_call.1} parent=57 // loop_footer
                  %s323 = sadd.s32 %s321, 1
                $region64: #{tpu_custom_call.1} parent=57 // loop_footer_branch
                  %320 = sbr.rel target = $region60
                $region65: #{tpu_custom_call.1} parent=57 // loop_exit
                  _
                %s336 = sshrl.u32 %s196, 3
                %s337 = sand.u32 %s196, 7
                %s338 = smul.u32 %s336, 8
                %s339 = smul.u32 4, %s338
                %s340 = scalar_lea.vmem %s195, %s339
                %s341 = smul.u32 4, %s338
                %s342 = scalar_lea.vmem %s183, %s341 [#allocation2]
                // While loop
                $region66: #{tpu_custom_call.1} parent=57 // loop_pre_header
                  _
                $region67: #{tpu_custom_call.1} parent=57 // loop_header
                  %s344 = sphi 0, %s346
                  %p345 = scmp.ge.s32.totalorder %s344, %s337
                  %s349 = sphi 0, %s354
                  %s350 = sphi %s340, %s357
                  %s351 = sphi %s342, %s358
                $region68: #{tpu_custom_call.1} parent=57 // loop_header_branch
                  %348 = sbr.rel (%p345) target = $region72
                $region69: #{tpu_custom_call.1} parent=57 // loop_body
                  %s352 = sadd.s32 1, %s349
                  %p353 = scmp.ge.s32.totalorder %s352, %s337
                  %s354 = scalar_select %p353, 0, %s352
                  %s355 = smul.u32 %s354, 4
                  %s356 = smul.u32 %s354, 4
                  %s357 = scalar_lea.vmem %s340, %s355
                  %s358 = scalar_lea.vmem %s342, %s356 [#allocation2]
                $region70: #{tpu_custom_call.1} parent=57 // loop_footer
                  %s346 = sadd.s32 %s344, 1
                $region71: #{tpu_custom_call.1} parent=57 // loop_footer_branch
                  %343 = sbr.rel target = $region67
                $region72: #{tpu_custom_call.1} parent=57 // loop_exit
                  _
                %s360 = sshrl.u32 %s196, 3
                // While loop
                $region73: #{tpu_custom_call.1} parent=57 // loop_pre_header
                  _
                $region74: #{tpu_custom_call.1} parent=57 // loop_header
                  %s362 = sphi 0, %s364
                  %p363 = scmp.ge.s32.totalorder %s362, %s360
                  %s367 = sphi 0, %s436
                  %s368 = sphi %s195, %s439
                  %s369 = sphi %s183, %s440
                $region75: #{tpu_custom_call.1} parent=57 // loop_header_branch
                  %366 = sbr.rel (%p363) target = $region79
                $region76: #{tpu_custom_call.1} parent=57 // loop_body
                  %v370 = vld [vmem:[%s368] sm:$0xf]
                  %371 = vst [vmem:[%s369] sm:$0xf] %v370
                  %v372 = vld [vmem:[%s368 + $0x4] sm:$0xf]
                  %373 = vst [vmem:[%s369 + $0x4] sm:$0xf] %v372
                  %v374 = vld [vmem:[%s368 + $0x8] sm:$0xf]
                  %375 = vst [vmem:[%s369 + $0x8] sm:$0xf] %v374
                  %v376 = vld [vmem:[%s368 + $0xc] sm:$0xf]
                  %377 = vst [vmem:[%s369 + $0xc] sm:$0xf] %v376
                  %v378 = vld [vmem:[%s368 + $0x10] sm:$0xf]
                  %379 = vst [vmem:[%s369 + $0x10] sm:$0xf] %v378
                  %v380 = vld [vmem:[%s368 + $0x14] sm:$0xf]
                  %381 = vst [vmem:[%s369 + $0x14] sm:$0xf] %v380
                  %v382 = vld [vmem:[%s368 + $0x18] sm:$0xf]
                  %383 = vst [vmem:[%s369 + $0x18] sm:$0xf] %v382
                  %v384 = vld [vmem:[%s368 + $0x1c] sm:$0xf]
                  %385 = vst [vmem:[%s369 + $0x1c] sm:$0xf] %v384
                  %v386 = vld [vmem:[%s368 + $0x28] sm:$0xf]
                  %387 = vst [vmem:[%s369 + $0x20] sm:$0xf] %v386
                  %v388 = vld [vmem:[%s368 + $0x2c] sm:$0xf]
                  %389 = vst [vmem:[%s369 + $0x24] sm:$0xf] %v388
                  %v390 = vld [vmem:[%s368 + $0x30] sm:$0xf]
                  %391 = vst [vmem:[%s369 + $0x28] sm:$0xf] %v390
                  %v392 = vld [vmem:[%s368 + $0x34] sm:$0xf]
                  %393 = vst [vmem:[%s369 + $0x2c] sm:$0xf] %v392
                  %v394 = vld [vmem:[%s368 + $0x38] sm:$0xf]
                  %395 = vst [vmem:[%s369 + $0x30] sm:$0xf] %v394
                  %v396 = vld [vmem:[%s368 + $0x3c] sm:$0xf]
                  %397 = vst [vmem:[%s369 + $0x34] sm:$0xf] %v396
                  %v398 = vld [vmem:[%s368 + $0x40] sm:$0xf]
                  %399 = vst [vmem:[%s369 + $0x38] sm:$0xf] %v398
                  %v400 = vld [vmem:[%s368 + $0x44] sm:$0xf]
                  %401 = vst [vmem:[%s369 + $0x3c] sm:$0xf] %v400
                  %v402 = vld [vmem:[%s368 + $0x50] sm:$0xf]
                  %403 = vst [vmem:[%s369 + $0x40] sm:$0xf] %v402
                  %v404 = vld [vmem:[%s368 + $0x54] sm:$0xf]
                  %405 = vst [vmem:[%s369 + $0x44] sm:$0xf] %v404
                  %v406 = vld [vmem:[%s368 + $0x58] sm:$0xf]
                  %407 = vst [vmem:[%s369 + $0x48] sm:$0xf] %v406
                  %v408 = vld [vmem:[%s368 + $0x5c] sm:$0xf]
                  %409 = vst [vmem:[%s369 + $0x4c] sm:$0xf] %v408
                  %v410 = vld [vmem:[%s368 + $0x60] sm:$0xf]
                  %411 = vst [vmem:[%s369 + $0x50] sm:$0xf] %v410
                  %v412 = vld [vmem:[%s368 + $0x64] sm:$0xf]
                  %413 = vst [vmem:[%s369 + $0x54] sm:$0xf] %v412
                  %v414 = vld [vmem:[%s368 + $0x68] sm:$0xf]
                  %415 = vst [vmem:[%s369 + $0x58] sm:$0xf] %v414
                  %v416 = vld [vmem:[%s368 + $0x6c] sm:$0xf]
                  %417 = vst [vmem:[%s369 + $0x5c] sm:$0xf] %v416
                  %v418 = vld [vmem:[%s368 + $0x78] sm:$0xf]
                  %419 = vst [vmem:[%s369 + $0x60] sm:$0xf] %v418
                  %v420 = vld [vmem:[%s368 + $0x7c] sm:$0xf]
                  %421 = vst [vmem:[%s369 + $0x64] sm:$0xf] %v420
                  %v422 = vld [vmem:[%s368 + $0x80] sm:$0xf]
                  %423 = vst [vmem:[%s369 + $0x68] sm:$0xf] %v422
                  %v424 = vld [vmem:[%s368 + $0x84] sm:$0xf]
                  %425 = vst [vmem:[%s369 + $0x6c] sm:$0xf] %v424
                  %v426 = vld [vmem:[%s368 + $0x88] sm:$0xf]
                  %427 = vst [vmem:[%s369 + $0x70] sm:$0xf] %v426
                  %v428 = vld [vmem:[%s368 + $0x8c] sm:$0xf]
                  %429 = vst [vmem:[%s369 + $0x74] sm:$0xf] %v428
                  %v430 = vld [vmem:[%s368 + $0x90] sm:$0xf]
                  %431 = vst [vmem:[%s369 + $0x78] sm:$0xf] %v430
                  %v432 = vld [vmem:[%s368 + $0x94] sm:$0xf]
                  %433 = vst [vmem:[%s369 + $0x7c] sm:$0xf] %v432
                  %s434 = sadd.s32 1, %s367
                  %p435 = scmp.ge.s32.totalorder %s434, %s360
                  %s436 = scalar_select %p435, 0, %s434
                  %s437 = smul.u32 %s436, 32
                  %s438 = smul.u32 %s436, 32
                  %s439 = scalar_lea.vmem %s195, %s437
                  %s440 = scalar_lea.vmem %s183, %s438 [#allocation2]
                $region77: #{tpu_custom_call.1} parent=57 // loop_footer
                  %s364 = sadd.s32 %s362, 1
                $region78: #{tpu_custom_call.1} parent=57 // loop_footer_branch
                  %361 = sbr.rel target = $region74
                $region79: #{tpu_custom_call.1} parent=57 // loop_exit
                  _
                %s441 = sshrl.u32 %s196, 3
                %s442 = sand.u32 %s196, 7
                %s443 = smul.u32 %s441, 8
                %s444 = smul.u32 4, %s443
                %s445 = scalar_lea.vmem %s195, %s444
                %s446 = smul.u32 4, %s443
                %s447 = scalar_lea.vmem %s183, %s446 [#allocation2]
                // While loop
                $region80: #{tpu_custom_call.1} parent=57 // loop_pre_header
                  _
                $region81: #{tpu_custom_call.1} parent=57 // loop_header
                  %s449 = sphi 0, %s451
                  %p450 = scmp.ge.s32.totalorder %s449, %s442
                  %s454 = sphi 0, %s467
                  %s455 = sphi %s445, %s470
                  %s456 = sphi %s447, %s471
                $region82: #{tpu_custom_call.1} parent=57 // loop_header_branch
                  %453 = sbr.rel (%p450) target = $region86
                $region83: #{tpu_custom_call.1} parent=57 // loop_body
                  %v457 = vld [vmem:[%s455] sm:$0xf]
                  %458 = vst [vmem:[%s456] sm:$0xf] %v457
                  %v459 = vld [vmem:[%s455 + $0x28] sm:$0xf]
                  %460 = vst [vmem:[%s456 + $0x20] sm:$0xf] %v459
                  %v461 = vld [vmem:[%s455 + $0x50] sm:$0xf]
                  %462 = vst [vmem:[%s456 + $0x40] sm:$0xf] %v461
                  %v463 = vld [vmem:[%s455 + $0x78] sm:$0xf]
                  %464 = vst [vmem:[%s456 + $0x60] sm:$0xf] %v463
                  %s465 = sadd.s32 1, %s454
                  %p466 = scmp.ge.s32.totalorder %s465, %s442
                  %s467 = scalar_select %p466, 0, %s465
                  %s468 = smul.u32 %s467, 4
                  %s469 = smul.u32 %s467, 4
                  %s470 = scalar_lea.vmem %s445, %s468
                  %s471 = scalar_lea.vmem %s447, %s469 [#allocation2]
                $region84: #{tpu_custom_call.1} parent=57 // loop_footer
                  %s451 = sadd.s32 %s449, 1
                $region85: #{tpu_custom_call.1} parent=57 // loop_footer_branch
                  %448 = sbr.rel target = $region81
                $region86: #{tpu_custom_call.1} parent=57 // loop_exit
                  _
              $region58: #{tpu_custom_call.1} parent=35 // pred_fallthru
                _
            $region36: #{tpu_custom_call.1} parent=31 // pred_fallthru
              _
            // Predicated region
            $region37: #{tpu_custom_call.1} parent=31 // pred_check
              _
            $region38: #{tpu_custom_call.1} parent=31 // pred_check_branch
              %203 = sbr.rel (0) target = $region40
            $region39: #{tpu_custom_call.1} parent=31 // pred_region
              %s205 = sshrl.u32 %s196, 3
              // While loop
              $region41: #{tpu_custom_call.1} parent=39 // loop_pre_header
                _
              $region42: #{tpu_custom_call.1} parent=39 // loop_header
                %s207 = sphi 0, %s209
                %p208 = scmp.ge.s32.totalorder %s207, %s205
                %s212 = sphi 0, %s281
                %s213 = sphi %s195, %s284
                %s214 = sphi %s183, %s285
              $region43: #{tpu_custom_call.1} parent=39 // loop_header_branch
                %211 = sbr.rel (%p208) target = $region47
              $region44: #{tpu_custom_call.1} parent=39 // loop_body
                %v215 = vld [vmem:[%s213] sm:$0xf]
                %216 = vst [vmem:[%s214] sm:$0xf] %v215
                %v217 = vld [vmem:[%s213 + $0x4] sm:$0xf]
                %218 = vst [vmem:[%s214 + $0x4] sm:$0xf] %v217
                %v219 = vld [vmem:[%s213 + $0x8] sm:$0xf]
                %220 = vst [vmem:[%s214 + $0x8] sm:$0xf] %v219
                %v221 = vld [vmem:[%s213 + $0xc] sm:$0xf]
                %222 = vst [vmem:[%s214 + $0xc] sm:$0xf] %v221
                %v223 = vld [vmem:[%s213 + $0x10] sm:$0xf]
                %224 = vst [vmem:[%s214 + $0x10] sm:$0xf] %v223
                %v225 = vld [vmem:[%s213 + $0x14] sm:$0xf]
                %226 = vst [vmem:[%s214 + $0x14] sm:$0xf] %v225
                %v227 = vld [vmem:[%s213 + $0x18] sm:$0xf]
                %228 = vst [vmem:[%s214 + $0x18] sm:$0xf] %v227
                %v229 = vld [vmem:[%s213 + $0x1c] sm:$0xf]
                %230 = vst [vmem:[%s214 + $0x1c] sm:$0xf] %v229
                %v231 = vld [vmem:[%s213 + $0x28] sm:$0xf]
                %232 = vst [vmem:[%s214 + $0x20] sm:$0xf] %v231
                %v233 = vld [vmem:[%s213 + $0x2c] sm:$0xf]
                %234 = vst [vmem:[%s214 + $0x24] sm:$0xf] %v233
                %v235 = vld [vmem:[%s213 + $0x30] sm:$0xf]
                %236 = vst [vmem:[%s214 + $0x28] sm:$0xf] %v235
                %v237 = vld [vmem:[%s213 + $0x34] sm:$0xf]
                %238 = vst [vmem:[%s214 + $0x2c] sm:$0xf] %v237
                %v239 = vld [vmem:[%s213 + $0x38] sm:$0xf]
                %240 = vst [vmem:[%s214 + $0x30] sm:$0xf] %v239
                %v241 = vld [vmem:[%s213 + $0x3c] sm:$0xf]
                %242 = vst [vmem:[%s214 + $0x34] sm:$0xf] %v241
                %v243 = vld [vmem:[%s213 + $0x40] sm:$0xf]
                %244 = vst [vmem:[%s214 + $0x38] sm:$0xf] %v243
                %v245 = vld [vmem:[%s213 + $0x44] sm:$0xf]
                %246 = vst [vmem:[%s214 + $0x3c] sm:$0xf] %v245
                %v247 = vld [vmem:[%s213 + $0x50] sm:$0xf]
                %248 = vst [vmem:[%s214 + $0x40] sm:$0xf] %v247
                %v249 = vld [vmem:[%s213 + $0x54] sm:$0xf]
                %250 = vst [vmem:[%s214 + $0x44] sm:$0xf] %v249
                %v251 = vld [vmem:[%s213 + $0x58] sm:$0xf]
                %252 = vst [vmem:[%s214 + $0x48] sm:$0xf] %v251
                %v253 = vld [vmem:[%s213 + $0x5c] sm:$0xf]
                %254 = vst [vmem:[%s214 + $0x4c] sm:$0xf] %v253
                %v255 = vld [vmem:[%s213 + $0x60] sm:$0xf]
                %256 = vst [vmem:[%s214 + $0x50] sm:$0xf] %v255
                %v257 = vld [vmem:[%s213 + $0x64] sm:$0xf]
                %258 = vst [vmem:[%s214 + $0x54] sm:$0xf] %v257
                %v259 = vld [vmem:[%s213 + $0x68] sm:$0xf]
                %260 = vst [vmem:[%s214 + $0x58] sm:$0xf] %v259
                %v261 = vld [vmem:[%s213 + $0x6c] sm:$0xf]
                %262 = vst [vmem:[%s214 + $0x5c] sm:$0xf] %v261
                %v263 = vld [vmem:[%s213 + $0x78] sm:$0xf]
                %264 = vst [vmem:[%s214 + $0x60] sm:$0xf] %v263
                %v265 = vld [vmem:[%s213 + $0x7c] sm:$0xf]
                %266 = vst [vmem:[%s214 + $0x64] sm:$0xf] %v265
                %v267 = vld [vmem:[%s213 + $0x80] sm:$0xf]
                %268 = vst [vmem:[%s214 + $0x68] sm:$0xf] %v267
                %v269 = vld [vmem:[%s213 + $0x84] sm:$0xf]
                %270 = vst [vmem:[%s214 + $0x6c] sm:$0xf] %v269
                %v271 = vld [vmem:[%s213 + $0x88] sm:$0xf]
                %272 = vst [vmem:[%s214 + $0x70] sm:$0xf] %v271
                %v273 = vld [vmem:[%s213 + $0x8c] sm:$0xf]
                %274 = vst [vmem:[%s214 + $0x74] sm:$0xf] %v273
                %v275 = vld [vmem:[%s213 + $0x90] sm:$0xf]
                %276 = vst [vmem:[%s214 + $0x78] sm:$0xf] %v275
                %v277 = vld [vmem:[%s213 + $0x94] sm:$0xf]
                %278 = vst [vmem:[%s214 + $0x7c] sm:$0xf] %v277
                %s279 = sadd.s32 1, %s212
                %p280 = scmp.ge.s32.totalorder %s279, %s205
                %s281 = scalar_select %p280, 0, %s279
                %s282 = smul.u32 %s281, 32
                %s283 = smul.u32 %s281, 32
                %s284 = scalar_lea.vmem %s195, %s282
                %s285 = scalar_lea.vmem %s183, %s283 [#allocation2]
              $region45: #{tpu_custom_call.1} parent=39 // loop_footer
                %s209 = sadd.s32 %s207, 1
              $region46: #{tpu_custom_call.1} parent=39 // loop_footer_branch
                %206 = sbr.rel target = $region42
              $region47: #{tpu_custom_call.1} parent=39 // loop_exit
                _
              %s286 = sshrl.u32 %s196, 3
              %s287 = sand.u32 %s196, 7
              %s288 = smul.u32 %s286, 8
              %s289 = smul.u32 4, %s288
              %s290 = scalar_lea.vmem %s195, %s289
              %s291 = smul.u32 4, %s288
              %s292 = scalar_lea.vmem %s183, %s291 [#allocation2]
              // While loop
              $region48: #{tpu_custom_call.1} parent=39 // loop_pre_header
                _
              $region49: #{tpu_custom_call.1} parent=39 // loop_header
                %s294 = sphi 0, %s296
                %p295 = scmp.ge.s32.totalorder %s294, %s287
                %s299 = sphi 0, %s312
                %s300 = sphi %s290, %s315
                %s301 = sphi %s292, %s316
              $region50: #{tpu_custom_call.1} parent=39 // loop_header_branch
                %298 = sbr.rel (%p295) target = $region54
              $region51: #{tpu_custom_call.1} parent=39 // loop_body
                %v302 = vld [vmem:[%s300] sm:$0xf]
                %303 = vst [vmem:[%s301] sm:$0xf] %v302
                %v304 = vld [vmem:[%s300 + $0x28] sm:$0xf]
                %305 = vst [vmem:[%s301 + $0x20] sm:$0xf] %v304
                %v306 = vld [vmem:[%s300 + $0x50] sm:$0xf]
                %307 = vst [vmem:[%s301 + $0x40] sm:$0xf] %v306
                %v308 = vld [vmem:[%s300 + $0x78] sm:$0xf]
                %309 = vst [vmem:[%s301 + $0x60] sm:$0xf] %v308
                %s310 = sadd.s32 1, %s299
                %p311 = scmp.ge.s32.totalorder %s310, %s287
                %s312 = scalar_select %p311, 0, %s310
                %s313 = smul.u32 %s312, 4
                %s314 = smul.u32 %s312, 4
                %s315 = scalar_lea.vmem %s290, %s313
                %s316 = scalar_lea.vmem %s292, %s314 [#allocation2]
              $region52: #{tpu_custom_call.1} parent=39 // loop_footer
                %s296 = sadd.s32 %s294, 1
              $region53: #{tpu_custom_call.1} parent=39 // loop_footer_branch
                %293 = sbr.rel target = $region49
              $region54: #{tpu_custom_call.1} parent=39 // loop_exit
                _
            $region40: #{tpu_custom_call.1} parent=31 // pred_fallthru
              _
          $region32: #{tpu_custom_call.1} parent=27 // pred_fallthru
            _
          %472 = vnop
        $region28: #{tpu_custom_call.1} parent=23 // pred_fallthru
          _
        // Predicated region
        $region87: #{tpu_custom_call.1} parent=23 // pred_check
          %p473 = pneg %p76
        $region88: #{tpu_custom_call.1} parent=23 // pred_check_branch
          %475 = sbr.rel (%p473) target = $region90
        $region89: #{tpu_custom_call.1} parent=23 // pred_region
          %s476 = sand.u32 %s66, 1
          %s477 = sand.u32 %s66, 1
          %s478 = smul.addr %s477, 32
          %s479 = scalar_lea.vmem [#allocation3], %s478
          %s480 = sadd.s32 %s18, 1
          %s481 = smul.u32 %s480, 4
          %s482 = smul.addr %s481, 2
          %s483 = smul.addr %s17, 40
          %s484 = sadd.s32 %s482, %s483
          %s485 = smul.addr %s484, 4
          %s486 = scalar_lea.vmem %s1, %s485
          // Predicated region
          $region91: #{tpu_custom_call.1} parent=89 // pred_check
            _
          $region92: #{tpu_custom_call.1} parent=89 // pred_check_branch
            %488 = sbr.rel (0) target = $region94
          $region93: #{tpu_custom_call.1} parent=89 // pred_region
            // Predicated region
            $region95: #{tpu_custom_call.1} parent=93 // pred_check
              _
            $region96: #{tpu_custom_call.1} parent=93 // pred_check_branch
              %490 = sbr.rel target = $region98
            $region97: #{tpu_custom_call.1} parent=93 // pred_region
              // Predicated region
              $region110: #{tpu_custom_call.1} parent=97 // pred_check
                _
              $region111: #{tpu_custom_call.1} parent=97 // pred_check_branch
                %519 = sbr.rel (0) target = $region113
              $region112: #{tpu_custom_call.1} parent=97 // pred_region
                loop: start=0, step=1, limit=1
                $region114: #{tpu_custom_call.1} parent=112 // loop_pre_header
                  _
                $region115: #{tpu_custom_call.1} parent=112 // loop_header
                  %s521 = sphi 0, %s525
                  %p522 = scmp.ge.s32.totalorder %s521, 1
                  %s526 = sphi %s486, %s486
                  %s527 = sphi %s479, %s479
                $region116: #{tpu_custom_call.1} parent=112 // loop_header_branch
                  %524 = sbr.rel (%p522) target = $region120
                $region117: #{tpu_custom_call.1} parent=112 // loop_body
                  _
                $region118: #{tpu_custom_call.1} parent=112 // loop_footer
                  %s525 = sadd.s32 1, %s521
                $region119: #{tpu_custom_call.1} parent=112 // loop_footer_branch
                  %520 = sbr.rel target = $region115
                $region120: #{tpu_custom_call.1} parent=112 // loop_exit
                  _
                loop: start=0, step=1, limit=1
                $region121: #{tpu_custom_call.1} parent=112 // loop_pre_header
                  _
                $region122: #{tpu_custom_call.1} parent=112 // loop_header
                  %s530 = sphi 0, %s534
                  %p531 = scmp.ge.s32.totalorder %s530, 1
                  %s535 = sphi %s486, %s486
                  %s536 = sphi %s479, %s479
                $region123: #{tpu_custom_call.1} parent=112 // loop_header_branch
                  %533 = sbr.rel (%p531) target = $region127
                $region124: #{tpu_custom_call.1} parent=112 // loop_body
                  %v537 = vld [vmem:[%s535] sm:$0xf]
                  %538 = vst [vmem:[%s536] sm:$0xf] %v537
                  %v539 = vld [vmem:[%s535 + $0x4] sm:$0xf]
                  %540 = vst [vmem:[%s536 + $0x4] sm:$0xf] %v539
                  %v541 = vld [vmem:[%s535 + $0x28] sm:$0xf]
                  %542 = vst [vmem:[%s536 + $0x8] sm:$0xf] %v541
                  %v543 = vld [vmem:[%s535 + $0x2c] sm:$0xf]
                  %544 = vst [vmem:[%s536 + $0xc] sm:$0xf] %v543
                  %v545 = vld [vmem:[%s535 + $0x50] sm:$0xf]
                  %546 = vst [vmem:[%s536 + $0x10] sm:$0xf] %v545
                  %v547 = vld [vmem:[%s535 + $0x54] sm:$0xf]
                  %548 = vst [vmem:[%s536 + $0x14] sm:$0xf] %v547
                  %v549 = vld [vmem:[%s535 + $0x78] sm:$0xf]
                  %550 = vst [vmem:[%s536 + $0x18] sm:$0xf] %v549
                  %v551 = vld [vmem:[%s535 + $0x7c] sm:$0xf]
                  %552 = vst [vmem:[%s536 + $0x1c] sm:$0xf] %v551
                $region125: #{tpu_custom_call.1} parent=112 // loop_footer
                  %s534 = sadd.s32 1, %s530
                $region126: #{tpu_custom_call.1} parent=112 // loop_footer_branch
                  %529 = sbr.rel target = $region122
                $region127: #{tpu_custom_call.1} parent=112 // loop_exit
                  _
              $region113: #{tpu_custom_call.1} parent=97 // pred_fallthru
                _
            $region98: #{tpu_custom_call.1} parent=93 // pred_fallthru
              _
            // Predicated region
            $region99: #{tpu_custom_call.1} parent=93 // pred_check
              _
            $region100: #{tpu_custom_call.1} parent=93 // pred_check_branch
              %492 = sbr.rel (0) target = $region102
            $region101: #{tpu_custom_call.1} parent=93 // pred_region
              loop: start=0, step=1, limit=1
              $region103: #{tpu_custom_call.1} parent=101 // loop_pre_header
                _
              $region104: #{tpu_custom_call.1} parent=101 // loop_header
                %s495 = sphi 0, %s499
                %p496 = scmp.ge.s32.totalorder %s495, 1
                %s500 = sphi %s486, %s486
                %s501 = sphi %s479, %s479
              $region105: #{tpu_custom_call.1} parent=101 // loop_header_branch
                %498 = sbr.rel (%p496) target = $region109
              $region106: #{tpu_custom_call.1} parent=101 // loop_body
                %v502 = vld [vmem:[%s500] sm:$0xf]
                %503 = vst [vmem:[%s501] sm:$0xf] %v502
                %v504 = vld [vmem:[%s500 + $0x4] sm:$0xf]
                %505 = vst [vmem:[%s501 + $0x4] sm:$0xf] %v504
                %v506 = vld [vmem:[%s500 + $0x28] sm:$0xf]
                %507 = vst [vmem:[%s501 + $0x8] sm:$0xf] %v506
                %v508 = vld [vmem:[%s500 + $0x2c] sm:$0xf]
                %509 = vst [vmem:[%s501 + $0xc] sm:$0xf] %v508
                %v510 = vld [vmem:[%s500 + $0x50] sm:$0xf]
                %511 = vst [vmem:[%s501 + $0x10] sm:$0xf] %v510
                %v512 = vld [vmem:[%s500 + $0x54] sm:$0xf]
                %513 = vst [vmem:[%s501 + $0x14] sm:$0xf] %v512
                %v514 = vld [vmem:[%s500 + $0x78] sm:$0xf]
                %515 = vst [vmem:[%s501 + $0x18] sm:$0xf] %v514
                %v516 = vld [vmem:[%s500 + $0x7c] sm:$0xf]
                %517 = vst [vmem:[%s501 + $0x1c] sm:$0xf] %v516
              $region107: #{tpu_custom_call.1} parent=101 // loop_footer
                %s499 = sadd.s32 1, %s495
              $region108: #{tpu_custom_call.1} parent=101 // loop_footer_branch
                %494 = sbr.rel target = $region104
              $region109: #{tpu_custom_call.1} parent=101 // loop_exit
                _
            $region102: #{tpu_custom_call.1} parent=93 // pred_fallthru
              _
          $region94: #{tpu_custom_call.1} parent=89 // pred_fallthru
            _
          %553 = vnop
        $region90: #{tpu_custom_call.1} parent=23 // pred_fallthru
          _
      $region24: #{tpu_custom_call.1} parent=5 // pred_fallthru
        _
      %p554 = scmp.le.s32.totalorder 1, %s10
      %p555 = scmp.lt.s32.totalorder %s10, 3
      %p556 = pnand %p554, %p555
      %p557 = pneg %p556
      // Predicated region
      $region128: #{tpu_custom_call.1} parent=5 // pred_check
        _
      $region129: #{tpu_custom_call.1} parent=5 // pred_check_branch
        %559 = sbr.rel (%p556) target = $region131
      $region130: #{tpu_custom_call.1} parent=5 // pred_region
        %s560 = ssub.s32 %s10, 1
        %s561 = sand.u32 %s37, 1
        %s562 = sand.u32 %s37, 1
        %s563 = smul.addr %s562, 128
        %s564 = scalar_lea.vmem [#allocation2], %s563
        // Predicated region
        $region132: #{tpu_custom_call.1} parent=130 // pred_check
          %p565 = pneg %p50
        $region133: #{tpu_custom_call.1} parent=130 // pred_check_branch
          %567 = sbr.rel (%p565) target = $region135
        $region134: #{tpu_custom_call.1} parent=130 // pred_region
          _
        $region135: #{tpu_custom_call.1} parent=130 // pred_fallthru
          _
        %s568 = sand.u32 %s69, 1
        %s569 = sand.u32 %s69, 1
        %s570 = smul.addr %s569, 32
        %s571 = scalar_lea.vmem [#allocation3], %s570
        // Predicated region
        $region136: #{tpu_custom_call.1} parent=130 // pred_check
          %p572 = pneg %p82
        $region137: #{tpu_custom_call.1} parent=130 // pred_check_branch
          %574 = sbr.rel (%p572) target = $region139
        $region138: #{tpu_custom_call.1} parent=130 // pred_region
          _
        $region139: #{tpu_custom_call.1} parent=130 // pred_fallthru
          _
        %s575 = sand.u32 %s37, 1
        %s576 = sand.u32 %s37, 1
        %s577 = smul.addr %s576, 128
        %s578 = scalar_lea.vmem [#allocation2], %s577
        %p579 = pneg %p50
        %p580 = pneg %p47
        %s581 = sand.u32 %s69, 1
        %s582 = sand.u32 %s69, 1
        %s583 = smul.addr %s582, 32
        %s584 = scalar_lea.vmem [#allocation3], %s583
        %p585 = pneg %p82
        %p586 = pneg %p79
        %p587 = pneg %p103
        %p588 = pneg %p100
        %p589 = pneg %p124
        %p590 = pneg %p121
        %p591 = pneg %p152
        %p592 = pneg %p149
        %s593 = smul.u32 4, %s20
        %p594 = scmp.lt.s32.totalorder %s19, 1
        %s595 = scalar_select %p594, %s19, 1
        %p596 = scmp.lt.s32.totalorder %s593, 3
        %s597 = scalar_select %p596, %s593, 3
        %s598 = smul.addr %s597, 6
        %s599 = smul.addr %s595, 72
        %s600 = sadd.s32 %s598, %s599
        %s601 = smul.addr %s600, 8
        %s602 = scalar_lea.vmem %s4, %s601
        %s603 = smul.u32 4, %s20
        %s604 = ssub.s32 5, %s603
        %p605 = scmp.lt.s32.totalorder %s604, 4
        %s606 = scalar_select %p605, %s604, 4
        %s607 = smul.u32 256, %s606
        %s608 = smul.u32 %s607, 2
        %s609 = sadd.s32 %s20, 1
        %s610 = smul.u32 %s609, 4
        %s611 = smul.u32 4, %s20
        %p612 = scmp.lt.s32.totalorder %s19, 1
        %s613 = scalar_select %p612, %s19, 1
        %p614 = scmp.lt.s32.totalorder %s611, 3
        %s615 = scalar_select %p614, %s611, 3
        %s616 = smul.addr %s615, 6
        %s617 = smul.addr %s613, 72
        %s618 = sadd.s32 %s616, %s617
        %s619 = smul.addr %s618, 8
        %s620 = scalar_lea.vmem %s4, %s619
        %s621 = smul.u32 4, %s20
        %v623 = vld [vmem:[%s3] sm:$0xff]
        %v624 = vld [vmem:[%s3 + $0x8] sm:$0xff]
        %v625 = vld [vmem:[%s3 + $0x10] sm:$0xff]
        %v626 = vld [vmem:[%s3 + $0x18] sm:$0xff]
        %v627 = vld [vmem:[%s3 + $0x20] sm:$0xff]
        %v628 = vld [vmem:[%s3 + $0x28] sm:$0xff]
        loop: start=0, step=1, limit=3
        $region140: #{tpu_custom_call.1} parent=130 // loop_pre_header
          _
        $region141: #{tpu_custom_call.1} parent=130 // loop_header
          %s630 = sphi 0, %s634
          %p631 = scmp.ge.s32.totalorder %s630, 3
        $region142: #{tpu_custom_call.1} parent=130 // loop_header_branch
          %633 = sbr.rel (%p631) target = $region146
        $region143: #{tpu_custom_call.1} parent=130 // loop_body
          %s635 = smul.u32 %s630, 8
          %s636 = smul.addr %s635, 4
          %s637 = scalar_lea.vmem %s564, %s636 [#allocation2]
          %v638 = vld [vmem:[%s637] sm:$0xf]
          %v639 = vld [vmem:[%s637 + $0x4] sm:$0x1]
          %v640 = vld [vmem:[%s2] sm:$0xf]
          %v641 = vld [vmem:[%s2 + $0x4] sm:$0xf]
          %v642 = vld [vmem:[%s2 + $0x8] sm:$0xf]
          %v643 = vld [vmem:[%s2 + $0xc] sm:$0xf]
          %v644 = vld [vmem:[%s2 + $0x10] sm:$0xf]
          %v645 = vld [vmem:[%s2 + $0x14] sm:$0xf]
          %s646 = sadd.s32 2, %s635
          %s647 = smul.addr %s646, 4
          %s648 = scalar_lea.vmem %s564, %s647 [#allocation2]
          %v649 = vld [vmem:[%s648] sm:$0xf]
          %v650 = vld [vmem:[%s648 + $0x4] sm:$0x1]
          %s651 = scalar_lea.vmem %s2, 24
          %v652 = vld [vmem:[%s651] sm:$0xf]
          %v653 = vld [vmem:[%s651 + $0x4] sm:$0xf]
          %v654 = vld [vmem:[%s651 + $0x8] sm:$0xf]
          %v655 = vld [vmem:[%s651 + $0xc] sm:$0xf]
          %v656 = vld [vmem:[%s651 + $0x10] sm:$0xf]
          %v657 = vld [vmem:[%s651 + $0x14] sm:$0xf]
          %v664 = vunpack.c.l.b16 %v652
          %v665 = vunpack.c.l.b16 %v653
          %v666 = vunpack.c.l.b16 %v654
          %v667 = vunpack.c.l.b16 %v655
          %v668 = vunpack.c.l.b16 %v656
          %v669 = vunpack.c.l.b16 %v657
          %v670 = vpack.c.b16 %v665, %v664
          %v671 = vpack.c.b16 %v667, %v666
          %v672 = vpack.c.b16 %v669, %v668
          %v675 = vunpack.c.l.b16 %v649
          %v676 = vunpack.c.l.b16 %v650
          %v677 = vpack.c.b16 %v676, %v675
          %vm678 = vcmask 80896
          %v680 = vsel %vm678, %v670, 0
          %v683 = vsel %vm678, %v671, 0
          %v686 = vsel %vm678, %v672, 0
          %vm688 = vcmask 1044480
          %v690 = vsel %vm688, %v677, 0
          %692 = vmatprep.subr.bf16.mxu0 0
          %693 = vmatpush1.bf16.msra.mxu0 %v690
          %694 = vmatprep.subr.bf16.mxu0 0
          %695 = vmatpush1.bf16.msra.mxu0 0
          %696 = vmatprep.subr.bf16.mxu0 0
          %697 = vmatpush1.bf16.msra.mxu0 0
          %698 = vmatprep.subr.bf16.mxu0 0
          %699 = vmatpush1.bf16.msra.mxu0 0
          %700 = vmatprep.subr.bf16.mxu0 0
          %701 = vmatpush1.bf16.msra.mxu0 0
          %702 = vmatprep.subr.bf16.mxu0 0
          %703 = vmatpush1.bf16.msra.mxu0 0
          %704 = vmatprep.subr.bf16.mxu0 0
          %705 = vmatpush1.bf16.msra.mxu0 0
          %706 = vmatprep.subr.bf16.mxu0 0
          %707 = vmatpush1.bf16.msra.mxu0 0
          %708 = vmatprep.subr.bf16.mxu0 0
          %709 = vmatpush1.bf16.msra.mxu0 0
          %710 = vmatprep.subr.bf16.mxu0 0
          %711 = vmatpush1.bf16.msra.mxu0 0
          %712 = vmatprep.subr.bf16.mxu0 0
          %713 = vmatpush1.bf16.msra.mxu0 0
          %714 = vmatprep.subr.bf16.mxu0 0
          %715 = vmatpush1.bf16.msra.mxu0 0
          %716 = vmatprep.subr.bf16.mxu0 0
          %717 = vmatpush1.bf16.msra.mxu0 0
          %718 = vmatprep.subr.bf16.mxu0 0
          %719 = vmatpush1.bf16.msra.mxu0 0
          %720 = vmatprep.subr.bf16.mxu0 0
          %721 = vmatpush1.bf16.msra.mxu0 0
          %722 = vmatprep.subr.bf16.mxu0 0
          %723 = vmatpush1.bf16.msra.mxu0 0
          %724 = vmatprep.mubr.bf16.mxu0 0
          %725 = vmatmul.mubr.bf16.gmra.mrb[0].mxu0 %v680
          %v726 = vpop.f32.mrb[0].mxu0
          %v727 = vadd.f32 0.0, %v726
          %v728 = vpop.f32.mrb[0].mxu0
          %v729 = vpop.f32.mrb[0].mxu0
          %v730 = vadd.f32 0.0, %v729
          %v731 = vpop.f32.mrb[0].mxu0
          %732 = vmatprep.mubr.bf16.mxu0 0
          %733 = vmatmul.mubr.bf16.gmra.mrb[0].mxu0 %v683
          %v734 = vpop.f32.mrb[0].mxu0
          %v735 = vadd.f32 0.0, %v734
          %v736 = vpop.f32.mrb[0].mxu0
          %v737 = vpop.f32.mrb[0].mxu0
          %v738 = vadd.f32 0.0, %v737
          %v739 = vpop.f32.mrb[0].mxu0
          %740 = vmatprep.mubr.bf16.mxu0 0
          %741 = vmatmul.mubr.bf16.gmra.mrb[0].mxu0 %v686
          %v742 = vpop.f32.mrb[0].mxu0
          %v743 = vadd.f32 0.0, %v742
          %v744 = vpop.f32.mrb[0].mxu0
          %v745 = vpop.f32.mrb[0].mxu0
          %v746 = vadd.f32 0.0, %v745
          %v747 = vpop.f32.mrb[0].mxu0
          %748 = vdwg.mxu0
          %v755 = vunpack.c.l.b16 %v640
          %v756 = vunpack.c.l.b16 %v641
          %v757 = vunpack.c.l.b16 %v642
          %v758 = vunpack.c.l.b16 %v643
          %v759 = vunpack.c.l.b16 %v644
          %v760 = vunpack.c.l.b16 %v645
          %v761 = vpack.c.b16 %v756, %v755
          %v762 = vpack.c.b16 %v758, %v757
          %v763 = vpack.c.b16 %v760, %v759
          %v766 = vunpack.c.l.b16 %v638
          %v767 = vunpack.c.l.b16 %v639
          %v768 = vpack.c.b16 %v767, %v766
          %v770 = vsel %vm678, %v761, 0
          %v773 = vsel %vm678, %v762, 0
          %v776 = vsel %vm678, %v763, 0
          %v779 = vsel %vm688, %v768, 0
          %781 = vmatprep.subr.bf16.mxu0 0
          %782 = vmatpush1.bf16.msra.mxu0 %v779
          %783 = vmatprep.subr.bf16.mxu0 0
          %784 = vmatpush1.bf16.msra.mxu0 0
          %785 = vmatprep.subr.bf16.mxu0 0
          %786 = vmatpush1.bf16.msra.mxu0 0
          %787 = vmatprep.subr.bf16.mxu0 0
          %788 = vmatpush1.bf16.msra.mxu0 0
          %789 = vmatprep.subr.bf16.mxu0 0
          %790 = vmatpush1.bf16.msra.mxu0 0
          %791 = vmatprep.subr.bf16.mxu0 0
          %792 = vmatpush1.bf16.msra.mxu0 0
          %793 = vmatprep.subr.bf16.mxu0 0
          %794 = vmatpush1.bf16.msra.mxu0 0
          %795 = vmatprep.subr.bf16.mxu0 0
          %796 = vmatpush1.bf16.msra.mxu0 0
          %797 = vmatprep.subr.bf16.mxu0 0
          %798 = vmatpush1.bf16.msra.mxu0 0
          %799 = vmatprep.subr.bf16.mxu0 0
          %800 = vmatpush1.bf16.msra.mxu0 0
          %801 = vmatprep.subr.bf16.mxu0 0
          %802 = vmatpush1.bf16.msra.mxu0 0
          %803 = vmatprep.subr.bf16.mxu0 0
          %804 = vmatpush1.bf16.msra.mxu0 0
          %805 = vmatprep.subr.bf16.mxu0 0
          %806 = vmatpush1.bf16.msra.mxu0 0
          %807 = vmatprep.subr.bf16.mxu0 0
          %808 = vmatpush1.bf16.msra.mxu0 0
          %809 = vmatprep.subr.bf16.mxu0 0
          %810 = vmatpush1.bf16.msra.mxu0 0
          %811 = vmatprep.subr.bf16.mxu0 0
          %812 = vmatpush1.bf16.msra.mxu0 0
          %813 = vmatprep.mubr.bf16.mxu0 0
          %814 = vmatmul.mubr.bf16.gmra.mrb[0].mxu0 %v770
          %v815 = vpop.f32.mrb[0].mxu0
          %v816 = vadd.f32 %v727, %v815
          %v817 = vpop.f32.mrb[0].mxu0
          %v818 = vpop.f32.mrb[0].mxu0
          %v819 = vadd.f32 %v730, %v818
          %v820 = vpop.f32.mrb[0].mxu0
          %821 = vmatprep.mubr.bf16.mxu0 0
          %822 = vmatmul.mubr.bf16.gmra.mrb[0].mxu0 %v773
          %v823 = vpop.f32.mrb[0].mxu0
          %v824 = vadd.f32 %v735, %v823
          %v825 = vpop.f32.mrb[0].mxu0
          %v826 = vpop.f32.mrb[0].mxu0
          %v827 = vadd.f32 %v738, %v826
          %v828 = vpop.f32.mrb[0].mxu0
          %829 = vmatprep.mubr.bf16.mxu0 0
          %830 = vmatmul.mubr.bf16.gmra.mrb[0].mxu0 %v776
          %v831 = vpop.f32.mrb[0].mxu0
          %v832 = vadd.f32 %v743, %v831
          %v833 = vpop.f32.mrb[0].mxu0
          %v834 = vpop.f32.mrb[0].mxu0
          %v835 = vadd.f32 %v746, %v834
          %v836 = vpop.f32.mrb[0].mxu0
          %837 = vdwg.mxu0
          %s838 = sadd.s32 %s630, 1
          %s839 = smul.u32 %s838, 8
          %s840 = smul.addr %s839, 4
          %s841 = scalar_lea.vmem %s564, %s840 [#allocation2]
          %v842 = vld [vmem:[%s841] sm:$0xf]
          %v843 = vld [vmem:[%s841 + $0x4] sm:$0x1]
          %s844 = scalar_lea.vmem %s2, 48
          %v845 = vld [vmem:[%s844] sm:$0xf]
          %v846 = vld [vmem:[%s844 + $0x4] sm:$0xf]
          %v847 = vld [vmem:[%s844 + $0x8] sm:$0xf]
          %v848 = vld [vmem:[%s844 + $0xc] sm:$0xf]
          %v849 = vld [vmem:[%s844 + $0x10] sm:$0xf]
          %v850 = vld [vmem:[%s844 + $0x14] sm:$0xf]
          %v857 = vunpack.c.l.b16 %v845
          %v858 = vunpack.c.l.b16 %v846
          %v859 = vunpack.c.l.b16 %v847
          %v860 = vunpack.c.l.b16 %v848
          %v861 = vunpack.c.l.b16 %v849
          %v862 = vunpack.c.l.b16 %v850
          %v863 = vpack.c.b16 %v858, %v857
          %v864 = vpack.c.b16 %v860, %v859
          %v865 = vpack.c.b16 %v862, %v861
          %v868 = vunpack.c.l.b16 %v842
          %v869 = vunpack.c.l.b16 %v843
          %v870 = vpack.c.b16 %v869, %v868
          %v872 = vsel %vm678, %v863, 0
          %v875 = vsel %vm678, %v864, 0
          %v878 = vsel %vm678, %v865, 0
          %v881 = vsel %vm688, %v870, 0
          %883 = vmatprep.subr.bf16.mxu0 0
          %884 = vmatpush1.bf16.msra.mxu0 %v881
          %885 = vmatprep.subr.bf16.mxu0 0
          %886 = vmatpush1.bf16.msra.mxu0 0
          %887 = vmatprep.subr.bf16.mxu0 0
          %888 = vmatpush1.bf16.msra.mxu0 0
          %889 = vmatprep.subr.bf16.mxu0 0
          %890 = vmatpush1.bf16.msra.mxu0 0
          %891 = vmatprep.subr.bf16.mxu0 0
          %892 = vmatpush1.bf16.msra.mxu0 0
          %893 = vmatprep.subr.bf16.mxu0 0
          %894 = vmatpush1.bf16.msra.mxu0 0
          %895 = vmatprep.subr.bf16.mxu0 0
          %896 = vmatpush1.bf16.msra.mxu0 0
          %897 = vmatprep.subr.bf16.mxu0 0
          %898 = vmatpush1.bf16.msra.mxu0 0
          %899 = vmatprep.subr.bf16.mxu0 0
          %900 = vmatpush1.bf16.msra.mxu0 0
          %901 = vmatprep.subr.bf16.mxu0 0
          %902 = vmatpush1.bf16.msra.mxu0 0
          %903 = vmatprep.subr.bf16.mxu0 0
          %904 = vmatpush1.bf16.msra.mxu0 0
          %905 = vmatprep.subr.bf16.mxu0 0
          %906 = vmatpush1.bf16.msra.mxu0 0
          %907 = vmatprep.subr.bf16.mxu0 0
          %908 = vmatpush1.bf16.msra.mxu0 0
          %909 = vmatprep.subr.bf16.mxu0 0
          %910 = vmatpush1.bf16.msra.mxu0 0
          %911 = vmatprep.subr.bf16.mxu0 0
          %912 = vmatpush1.bf16.msra.mxu0 0
          %913 = vmatprep.subr.bf16.mxu0 0
          %914 = vmatpush1.bf16.msra.mxu0 0
          %915 = vmatprep.mubr.bf16.mxu0 0
          %916 = vmatmul.mubr.bf16.gmra.mrb[0].mxu0 %v872
          %v917 = vpop.f32.mrb[0].mxu0
          %v918 = vadd.f32 0.0, %v917
          %v919 = vpop.f32.mrb[0].mxu0
          %v920 = vpop.f32.mrb[0].mxu0
          %v921 = vadd.f32 0.0, %v920
          %v922 = vpop.f32.mrb[0].mxu0
          %923 = vmatprep.mubr.bf16.mxu0 0
          %924 = vmatmul.mubr.bf16.gmra.mrb[0].mxu0 %v875
          %v925 = vpop.f32.mrb[0].mxu0
          %v926 = vadd.f32 0.0, %v925
          %v927 = vpop.f32.mrb[0].mxu0
          %v928 = vpop.f32.mrb[0].mxu0
          %v929 = vadd.f32 0.0, %v928
          %v930 = vpop.f32.mrb[0].mxu0
          %931 = vmatprep.mubr.bf16.mxu0 0
          %932 = vmatmul.mubr.bf16.gmra.mrb[0].mxu0 %v878
          %v933 = vpop.f32.mrb[0].mxu0
          %v934 = vadd.f32 0.0, %v933
          %v935 = vpop.f32.mrb[0].mxu0
          %v936 = vpop.f32.mrb[0].mxu0
          %v937 = vadd.f32 0.0, %v936
          %v938 = vpop.f32.mrb[0].mxu0
          %939 = vdwg.mxu0
          %v940 = vadd.f32 %v816, %v918
          %v941 = vadd.f32 %v819, %v921
          %v942 = vadd.f32 %v824, %v926
          %v943 = vadd.f32 %v827, %v929
          %v944 = vadd.f32 %v832, %v934
          %v945 = vadd.f32 %v835, %v937
          %s946 = sadd.s32 2, %s839
          %s947 = smul.addr %s946, 4
          %s948 = scalar_lea.vmem %s564, %s947 [#allocation2]
          %v949 = vld [vmem:[%s948] sm:$0xf]
          %v950 = vld [vmem:[%s948 + $0x4] sm:$0x1]
          %s951 = scalar_lea.vmem %s2, 72
          %v952 = vld [vmem:[%s951] sm:$0xf]
          %v953 = vld [vmem:[%s951 + $0x4] sm:$0xf]
          %v954 = vld [vmem:[%s951 + $0x8] sm:$0xf]
          %v955 = vld [vmem:[%s951 + $0xc] sm:$0xf]
          %v956 = vld [vmem:[%s951 + $0x10] sm:$0xf]
          %v957 = vld [vmem:[%s951 + $0x14] sm:$0xf]
          %v964 = vunpack.c.l.b16 %v952
          %v965 = vunpack.c.l.b16 %v953
          %v966 = vunpack.c.l.b16 %v954
          %v967 = vunpack.c.l.b16 %v955
          %v968 = vunpack.c.l.b16 %v956
          %v969 = vunpack.c.l.b16 %v957
          %v970 = vpack.c.b16 %v965, %v964
          %v971 = vpack.c.b16 %v967, %v966
          %v972 = vpack.c.b16 %v969, %v968
          %v975 = vunpack.c.l.b16 %v949
          %v976 = vunpack.c.l.b16 %v950
          %v977 = vpack.c.b16 %v976, %v975
          %v979 = vsel %vm678, %v970, 0
          %v982 = vsel %vm678, %v971, 0
          %v985 = vsel %vm678, %v972, 0
          %v988 = vsel %vm688, %v977, 0
          %990 = vmatprep.subr.bf16.mxu0 0
          %991 = vmatpush1.bf16.msra.mxu0 %v988
          %992 = vmatprep.subr.bf16.mxu0 0
          %993 = vmatpush1.bf16.msra.mxu0 0
          %994 = vmatprep.subr.bf16.mxu0 0
          %995 = vmatpush1.bf16.msra.mxu0 0
          %996 = vmatprep.subr.bf16.mxu0 0
          %997 = vmatpush1.bf16.msra.mxu0 0
          %998 = vmatprep.subr.bf16.mxu0 0
          %999 = vmatpush1.bf16.msra.mxu0 0
          %1000 = vmatprep.subr.bf16.mxu0 0
          %1001 = vmatpush1.bf16.msra.mxu0 0
          %1002 = vmatprep.subr.bf16.mxu0 0
          %1003 = vmatpush1.bf16.msra.mxu0 0
          %1004 = vmatprep.subr.bf16.mxu0 0
          %1005 = vmatpush1.bf16.msra.mxu0 0
          %1006 = vmatprep.subr.bf16.mxu0 0
          %1007 = vmatpush1.bf16.msra.mxu0 0
          %1008 = vmatprep.subr.bf16.mxu0 0
          %1009 = vmatpush1.bf16.msra.mxu0 0
          %1010 = vmatprep.subr.bf16.mxu0 0
          %1011 = vmatpush1.bf16.msra.mxu0 0
          %1012 = vmatprep.subr.bf16.mxu0 0
          %1013 = vmatpush1.bf16.msra.mxu0 0
          %1014 = vmatprep.subr.bf16.mxu0 0
          %1015 = vmatpush1.bf16.msra.mxu0 0
          %1016 = vmatprep.subr.bf16.mxu0 0
          %1017 = vmatpush1.bf16.msra.mxu0 0
          %1018 = vmatprep.subr.bf16.mxu0 0
          %1019 = vmatpush1.bf16.msra.mxu0 0
          %1020 = vmatprep.subr.bf16.mxu0 0
          %1021 = vmatpush1.bf16.msra.mxu0 0
          %1022 = vmatprep.mubr.bf16.mxu0 0
          %1023 = vmatmul.mubr.bf16.gmra.mrb[0].mxu0 %v979
          %v1024 = vpop.f32.mrb[0].mxu0
          %v1025 = vadd.f32 0.0, %v1024
          %v1026 = vpop.f32.mrb[0].mxu0
          %v1027 = vpop.f32.mrb[0].mxu0
          %v1028 = vadd.f32 0.0, %v1027
          %v1029 = vpop.f32.mrb[0].mxu0
          %1030 = vmatprep.mubr.bf16.mxu0 0
          %1031 = vmatmul.mubr.bf16.gmra.mrb[0].mxu0 %v982
          %v1032 = vpop.f32.mrb[0].mxu0
          %v1033 = vadd.f32 0.0, %v1032
          %v1034 = vpop.f32.mrb[0].mxu0
          %v1035 = vpop.f32.mrb[0].mxu0
          %v1036 = vadd.f32 0.0, %v1035
          %v1037 = vpop.f32.mrb[0].mxu0
          %1038 = vmatprep.mubr.bf16.mxu0 0
          %1039 = vmatmul.mubr.bf16.gmra.mrb[0].mxu0 %v985
          %v1040 = vpop.f32.mrb[0].mxu0
          %v1041 = vadd.f32 0.0, %v1040
          %v1042 = vpop.f32.mrb[0].mxu0
          %v1043 = vpop.f32.mrb[0].mxu0
          %v1044 = vadd.f32 0.0, %v1043
          %v1045 = vpop.f32.mrb[0].mxu0
          %1046 = vdwg.mxu0
          %v1047 = vadd.f32 %v940, %v1025
          %v1048 = vadd.f32 %v941, %v1028
          %v1049 = vadd.f32 %v942, %v1033
          %v1050 = vadd.f32 %v943, %v1036
          %v1051 = vadd.f32 %v944, %v1041
          %v1052 = vadd.f32 %v945, %v1044
          %1054 = vset.pattern.permute.xlu0 0
          %1055 = vperm.xlu0 %1054, %v623
          %v1056 = vpop.permute.xlu0 %1055
          %1059 = vset.pattern.permute.xlu0 0
          %1060 = vperm.xlu0 %1059, %v624
          %v1061 = vpop.permute.xlu0 %1060
          %1064 = vset.pattern.permute.xlu0 0
          %1065 = vperm.xlu0 %1064, %v625
          %v1066 = vpop.permute.xlu0 %1065
          %1069 = vset.pattern.permute.xlu0 0
          %1070 = vperm.xlu0 %1069, %v626
          %v1071 = vpop.permute.xlu0 %1070
          %1074 = vset.pattern.permute.xlu0 0
          %1075 = vperm.xlu0 %1074, %v627
          %v1076 = vpop.permute.xlu0 %1075
          %1079 = vset.pattern.permute.xlu0 0
          %1080 = vperm.xlu0 %1079, %v628
          %v1081 = vpop.permute.xlu0 %1080
          %v1083 = vadd.f32 %v1047, %v1056
          %v1084 = vadd.f32 %v1048, %v1061
          %v1085 = vadd.f32 %v1049, %v1066
          %v1086 = vadd.f32 %v1050, %v1071
          %v1087 = vadd.f32 %v1051, %v1076
          %v1088 = vadd.f32 %v1052, %v1081
          %s1089 = smul.u32 %s630, 192
          %s1090 = scalar_lea.vmem %s620, %s1089
          %vm1091 = vcmask 39936
          %1092 = vst.msk [vmem:[%s1090] sm:$0xff] %vm1091, %v1083
          %1093 = vst.msk [vmem:[%s1090 + $0x8] sm:$0xff] %vm1091, %v1084
          %1094 = vst.msk [vmem:[%s1090 + $0x10] sm:$0xff] %vm1091, %v1085
          %1095 = vst.msk [vmem:[%s1090 + $0x18] sm:$0xff] %vm1091, %v1086
          %1096 = vst.msk [vmem:[%s1090 + $0x20] sm:$0xff] %vm1091, %v1087
          %1097 = vst.msk [vmem:[%s1090 + $0x28] sm:$0xff] %vm1091, %v1088
          %v1098 = vld [vmem:[%s648] sm:$0xf]
          %v1099 = vld [vmem:[%s648 + $0x4] sm:$0x1]
          %v1100 = vld [vmem:[%s2] sm:$0xf]
          %v1101 = vld [vmem:[%s2 + $0x4] sm:$0xf]
          %v1102 = vld [vmem:[%s2 + $0x8] sm:$0xf]
          %v1103 = vld [vmem:[%s2 + $0xc] sm:$0xf]
          %v1104 = vld [vmem:[%s2 + $0x10] sm:$0xf]
          %v1105 = vld [vmem:[%s2 + $0x14] sm:$0xf]
          %s1106 = sadd.s32 4, %s635
          %s1107 = smul.addr %s1106, 4
          %s1108 = scalar_lea.vmem %s564, %s1107 [#allocation2]
          %v1109 = vld [vmem:[%s1108] sm:$0xf]
          %v1110 = vld [vmem:[%s1108 + $0x4] sm:$0x1]
          %v1111 = vld [vmem:[%s651] sm:$0xf]
          %v1112 = vld [vmem:[%s651 + $0x4] sm:$0xf]
          %v1113 = vld [vmem:[%s651 + $0x8] sm:$0xf]
          %v1114 = vld [vmem:[%s651 + $0xc] sm:$0xf]
          %v1115 = vld [vmem:[%s651 + $0x10] sm:$0xf]
          %v1116 = vld [vmem:[%s651 + $0x14] sm:$0xf]
          %v1123 = vunpack.c.l.b16 %v1111
          %v1124 = vunpack.c.l.b16 %v1112
          %v1125 = vunpack.c.l.b16 %v1113
          %v1126 = vunpack.c.l.b16 %v1114
          %v1127 = vunpack.c.l.b16 %v1115
          %v1128 = vunpack.c.l.b16 %v1116
          %v1129 = vpack.c.b16 %v1124, %v1123
          %v1130 = vpack.c.b16 %v1126, %v1125
          %v1131 = vpack.c.b16 %v1128, %v1127
          %v1134 = vunpack.c.l.b16 %v1109
          %v1135 = vunpack.c.l.b16 %v1110
          %v1136 = vpack.c.b16 %v1135, %v1134
          %v1138 = vsel %vm678, %v1129, 0
          %v1141 = vsel %vm678, %v1130, 0
          %v1144 = vsel %vm678, %v1131, 0
          %v1147 = vsel %vm688, %v1136, 0
          %1149 = vmatprep.subr.bf16.mxu0 0
          %1150 = vmatpush1.bf16.msra.mxu0 %v1147
          %1151 = vmatprep.subr.bf16.mxu0 0
          %1152 = vmatpush1.bf16.msra.mxu0 0
          %1153 = vmatprep.subr.bf16.mxu0 0
          %1154 = vmatpush1.bf16.msra.mxu0 0
          %1155 = vmatprep.subr.bf16.mxu0 0
          %1156 = vmatpush1.bf16.msra.mxu0 0
          %1157 = vmatprep.subr.bf16.mxu0 0
          %1158 = vmatpush1.bf16.msra.mxu0 0
          %1159 = vmatprep.subr.bf16.mxu0 0
          %1160 = vmatpush1.bf16.msra.mxu0 0
          %1161 = vmatprep.subr.bf16.mxu0 0
          %1162 = vmatpush1.bf16.msra.mxu0 0
          %1163 = vmatprep.subr.bf16.mxu0 0
          %1164 = vmatpush1.bf16.msra.mxu0 0
          %1165 = vmatprep.subr.bf16.mxu0 0
          %1166 = vmatpush1.bf16.msra.mxu0 0
          %1167 = vmatprep.subr.bf16.mxu0 0
          %1168 = vmatpush1.bf16.msra.mxu0 0
          %1169 = vmatprep.subr.bf16.mxu0 0
          %1170 = vmatpush1.bf16.msra.mxu0 0
          %1171 = vmatprep.subr.bf16.mxu0 0
          %1172 = vmatpush1.bf16.msra.mxu0 0
          %1173 = vmatprep.subr.bf16.mxu0 0
          %1174 = vmatpush1.bf16.msra.mxu0 0
          %1175 = vmatprep.subr.bf16.mxu0 0
          %1176 = vmatpush1.bf16.msra.mxu0 0
          %1177 = vmatprep.subr.bf16.mxu0 0
          %1178 = vmatpush1.bf16.msra.mxu0 0
          %1179 = vmatprep.subr.bf16.mxu0 0
          %1180 = vmatpush1.bf16.msra.mxu0 0
          %1181 = vmatprep.mubr.bf16.mxu0 0
          %1182 = vmatmul.mubr.bf16.gmra.mrb[0].mxu0 %v1138
          %v1183 = vpop.f32.mrb[0].mxu0
          %v1184 = vadd.f32 0.0, %v1183
          %v1185 = vpop.f32.mrb[0].mxu0
          %v1186 = vpop.f32.mrb[0].mxu0
          %v1187 = vadd.f32 0.0, %v1186
          %v1188 = vpop.f32.mrb[0].mxu0
          %1189 = vmatprep.mubr.bf16.mxu0 0
          %1190 = vmatmul.mubr.bf16.gmra.mrb[0].mxu0 %v1141
          %v1191 = vpop.f32.mrb[0].mxu0
          %v1192 = vadd.f32 0.0, %v1191
          %v1193 = vpop.f32.mrb[0].mxu0
          %v1194 = vpop.f32.mrb[0].mxu0
          %v1195 = vadd.f32 0.0, %v1194
          %v1196 = vpop.f32.mrb[0].mxu0
          %1197 = vmatprep.mubr.bf16.mxu0 0
          %1198 = vmatmul.mubr.bf16.gmra.mrb[0].mxu0 %v1144
          %v1199 = vpop.f32.mrb[0].mxu0
          %v1200 = vadd.f32 0.0, %v1199
          %v1201 = vpop.f32.mrb[0].mxu0
          %v1202 = vpop.f32.mrb[0].mxu0
          %v1203 = vadd.f32 0.0, %v1202
          %v1204 = vpop.f32.mrb[0].mxu0
          %1205 = vdwg.mxu0
          %v1212 = vunpack.c.l.b16 %v1100
          %v1213 = vunpack.c.l.b16 %v1101
          %v1214 = vunpack.c.l.b16 %v1102
          %v1215 = vunpack.c.l.b16 %v1103
          %v1216 = vunpack.c.l.b16 %v1104
          %v1217 = vunpack.c.l.b16 %v1105
          %v1218 = vpack.c.b16 %v1213, %v1212
          %v1219 = vpack.c.b16 %v1215, %v1214
          %v1220 = vpack.c.b16 %v1217, %v1216
          %v1223 = vunpack.c.l.b16 %v1098
          %v1224 = vunpack.c.l.b16 %v1099
          %v1225 = vpack.c.b16 %v1224, %v1223
          %v1227 = vsel %vm678, %v1218, 0
          %v1230 = vsel %vm678, %v1219, 0
          %v1233 = vsel %vm678, %v1220, 0
          %v1236 = vsel %vm688, %v1225, 0
          %1238 = vmatprep.subr.bf16.mxu0 0
          %1239 = vmatpush1.bf16.msra.mxu0 %v1236
          %1240 = vmatprep.subr.bf16.mxu0 0
          %1241 = vmatpush1.bf16.msra.mxu0 0
          %1242 = vmatprep.subr.bf16.mxu0 0
          %1243 = vmatpush1.bf16.msra.mxu0 0
          %1244 = vmatprep.subr.bf16.mxu0 0
          %1245 = vmatpush1.bf16.msra.mxu0 0
          %1246 = vmatprep.subr.bf16.mxu0 0
          %1247 = vmatpush1.bf16.msra.mxu0 0
          %1248 = vmatprep.subr.bf16.mxu0 0
          %1249 = vmatpush1.bf16.msra.mxu0 0
          %1250 = vmatprep.subr.bf16.mxu0 0
          %1251 = vmatpush1.bf16.msra.mxu0 0
          %1252 = vmatprep.subr.bf16.mxu0 0
          %1253 = vmatpush1.bf16.msra.mxu0 0
          %1254 = vmatprep.subr.bf16.mxu0 0
          %1255 = vmatpush1.bf16.msra.mxu0 0
          %1256 = vmatprep.subr.bf16.mxu0 0
          %1257 = vmatpush1.bf16.msra.mxu0 0
          %1258 = vmatprep.subr.bf16.mxu0 0
          %1259 = vmatpush1.bf16.msra.mxu0 0
          %1260 = vmatprep.subr.bf16.mxu0 0
          %1261 = vmatpush1.bf16.msra.mxu0 0
          %1262 = vmatprep.subr.bf16.mxu0 0
          %1263 = vmatpush1.bf16.msra.mxu0 0
          %1264 = vmatprep.subr.bf16.mxu0 0
          %1265 = vmatpush1.bf16.msra.mxu0 0
          %1266 = vmatprep.subr.bf16.mxu0 0
          %1267 = vmatpush1.bf16.msra.mxu0 0
          %1268 = vmatprep.subr.bf16.mxu0 0
          %1269 = vmatpush1.bf16.msra.mxu0 0
          %1270 = vmatprep.mubr.bf16.mxu0 0
          %1271 = vmatmul.mubr.bf16.gmra.mrb[0].mxu0 %v1227
          %v1272 = vpop.f32.mrb[0].mxu0
          %v1273 = vadd.f32 %v1184, %v1272
          %v1274 = vpop.f32.mrb[0].mxu0
          %v1275 = vpop.f32.mrb[0].mxu0
          %v1276 = vadd.f32 %v1187, %v1275
          %v1277 = vpop.f32.mrb[0].mxu0
          %1278 = vmatprep.mubr.bf16.mxu0 0
          %1279 = vmatmul.mubr.bf16.gmra.mrb[0].mxu0 %v1230
          %v1280 = vpop.f32.mrb[0].mxu0
          %v1281 = vadd.f32 %v1192, %v1280
          %v1282 = vpop.f32.mrb[0].mxu0
          %v1283 = vpop.f32.mrb[0].mxu0
          %v1284 = vadd.f32 %v1195, %v1283
          %v1285 = vpop.f32.mrb[0].mxu0
          %1286 = vmatprep.mubr.bf16.mxu0 0
          %1287 = vmatmul.mubr.bf16.gmra.mrb[0].mxu0 %v1233
          %v1288 = vpop.f32.mrb[0].mxu0
          %v1289 = vadd.f32 %v1200, %v1288
          %v1290 = vpop.f32.mrb[0].mxu0
          %v1291 = vpop.f32.mrb[0].mxu0
          %v1292 = vadd.f32 %v1203, %v1291
          %v1293 = vpop.f32.mrb[0].mxu0
          %1294 = vdwg.mxu0
          %v1295 = vld [vmem:[%s948] sm:$0xf]
          %v1296 = vld [vmem:[%s948 + $0x4] sm:$0x1]
          %v1297 = vld [vmem:[%s844] sm:$0xf]
          %v1298 = vld [vmem:[%s844 + $0x4] sm:$0xf]
          %v1299 = vld [vmem:[%s844 + $0x8] sm:$0xf]
          %v1300 = vld [vmem:[%s844 + $0xc] sm:$0xf]
          %v1301 = vld [vmem:[%s844 + $0x10] sm:$0xf]
          %v1302 = vld [vmem:[%s844 + $0x14] sm:$0xf]
          %v1309 = vunpack.c.l.b16 %v1297
          %v1310 = vunpack.c.l.b16 %v1298
          %v1311 = vunpack.c.l.b16 %v1299
          %v1312 = vunpack.c.l.b16 %v1300
          %v1313 = vunpack.c.l.b16 %v1301
          %v1314 = vunpack.c.l.b16 %v1302
          %v1315 = vpack.c.b16 %v1310, %v1309
          %v1316 = vpack.c.b16 %v1312, %v1311
          %v1317 = vpack.c.b16 %v1314, %v1313
          %v1320 = vunpack.c.l.b16 %v1295
          %v1321 = vunpack.c.l.b16 %v1296
          %v1322 = vpack.c.b16 %v1321, %v1320
          %v1324 = vsel %vm678, %v1315, 0
          %v1327 = vsel %vm678, %v1316, 0
          %v1330 = vsel %vm678, %v1317, 0
          %v1333 = vsel %vm688, %v1322, 0
          %1335 = vmatprep.subr.bf16.mxu0 0
          %1336 = vmatpush1.bf16.msra.mxu0 %v1333
          %1337 = vmatprep.subr.bf16.mxu0 0
          %1338 = vmatpush1.bf16.msra.mxu0 0
          %1339 = vmatprep.subr.bf16.mxu0 0
          %1340 = vmatpush1.bf16.msra.mxu0 0
          %1341 = vmatprep.subr.bf16.mxu0 0
          %1342 = vmatpush1.bf16.msra.mxu0 0
          %1343 = vmatprep.subr.bf16.mxu0 0
          %1344 = vmatpush1.bf16.msra.mxu0 0
          %1345 = vmatprep.subr.bf16.mxu0 0
          %1346 = vmatpush1.bf16.msra.mxu0 0
          %1347 = vmatprep.subr.bf16.mxu0 0
          %1348 = vmatpush1.bf16.msra.mxu0 0
          %1349 = vmatprep.subr.bf16.mxu0 0
          %1350 = vmatpush1.bf16.msra.mxu0 0
          %1351 = vmatprep.subr.bf16.mxu0 0
          %1352 = vmatpush1.bf16.msra.mxu0 0
          %1353 = vmatprep.subr.bf16.mxu0 0
          %1354 = vmatpush1.bf16.msra.mxu0 0
          %1355 = vmatprep.subr.bf16.mxu0 0
          %1356 = vmatpush1.bf16.msra.mxu0 0
          %1357 = vmatprep.subr.bf16.mxu0 0
          %1358 = vmatpush1.bf16.msra.mxu0 0
          %1359 = vmatprep.subr.bf16.mxu0 0
          %1360 = vmatpush1.bf16.msra.mxu0 0
          %1361 = vmatprep.subr.bf16.mxu0 0
          %1362 = vmatpush1.bf16.msra.mxu0 0
          %1363 = vmatprep.subr.bf16.mxu0 0
          %1364 = vmatpush1.bf16.msra.mxu0 0
          %1365 = vmatprep.subr.bf16.mxu0 0
          %1366 = vmatpush1.bf16.msra.mxu0 0
          %1367 = vmatprep.mubr.bf16.mxu0 0
          %1368 = vmatmul.mubr.bf16.gmra.mrb[0].mxu0 %v1324
          %v1369 = vpop.f32.mrb[0].mxu0
          %v1370 = vadd.f32 0.0, %v1369
          %v1371 = vpop.f32.mrb[0].mxu0
          %v1372 = vpop.f32.mrb[0].mxu0
          %v1373 = vadd.f32 0.0, %v1372
          %v1374 = vpop.f32.mrb[0].mxu0
          %1375 = vmatprep.mubr.bf16.mxu0 0
          %1376 = vmatmul.mubr.bf16.gmra.mrb[0].mxu0 %v1327
          %v1377 = vpop.f32.mrb[0].mxu0
          %v1378 = vadd.f32 0.0, %v1377
          %v1379 = vpop.f32.mrb[0].mxu0
          %v1380 = vpop.f32.mrb[0].mxu0
          %v1381 = vadd.f32 0.0, %v1380
          %v1382 = vpop.f32.mrb[0].mxu0
          %1383 = vmatprep.mubr.bf16.mxu0 0
          %1384 = vmatmul.mubr.bf16.gmra.mrb[0].mxu0 %v1330
          %v1385 = vpop.f32.mrb[0].mxu0
          %v1386 = vadd.f32 0.0, %v1385
          %v1387 = vpop.f32.mrb[0].mxu0
          %v1388 = vpop.f32.mrb[0].mxu0
          %v1389 = vadd.f32 0.0, %v1388
          %v1390 = vpop.f32.mrb[0].mxu0
          %1391 = vdwg.mxu0
          %v1392 = vadd.f32 %v1273, %v1370
          %v1393 = vadd.f32 %v1276, %v1373
          %v1394 = vadd.f32 %v1281, %v1378
          %v1395 = vadd.f32 %v1284, %v1381
          %v1396 = vadd.f32 %v1289, %v1386
          %v1397 = vadd.f32 %v1292, %v1389
          %s1398 = sadd.s32 4, %s839
          %s1399 = smul.addr %s1398, 4
          %s1400 = scalar_lea.vmem %s564, %s1399 [#allocation2]
          %v1401 = vld [vmem:[%s1400] sm:$0xf]
          %v1402 = vld [vmem:[%s1400 + $0x4] sm:$0x1]
          %v1403 = vld [vmem:[%s951] sm:$0xf]
          %v1404 = vld [vmem:[%s951 + $0x4] sm:$0xf]
          %v1405 = vld [vmem:[%s951 + $0x8] sm:$0xf]
          %v1406 = vld [vmem:[%s951 + $0xc] sm:$0xf]
          %v1407 = vld [vmem:[%s951 + $0x10] sm:$0xf]
          %v1408 = vld [vmem:[%s951 + $0x14] sm:$0xf]
          %v1415 = vunpack.c.l.b16 %v1403
          %v1416 = vunpack.c.l.b16 %v1404
          %v1417 = vunpack.c.l.b16 %v1405
          %v1418 = vunpack.c.l.b16 %v1406
          %v1419 = vunpack.c.l.b16 %v1407
          %v1420 = vunpack.c.l.b16 %v1408
          %v1421 = vpack.c.b16 %v1416, %v1415
          %v1422 = vpack.c.b16 %v1418, %v1417
          %v1423 = vpack.c.b16 %v1420, %v1419
          %v1426 = vunpack.c.l.b16 %v1401
          %v1427 = vunpack.c.l.b16 %v1402
          %v1428 = vpack.c.b16 %v1427, %v1426
          %v1430 = vsel %vm678, %v1421, 0
          %v1433 = vsel %vm678, %v1422, 0
          %v1436 = vsel %vm678, %v1423, 0
          %v1439 = vsel %vm688, %v1428, 0
          %1441 = vmatprep.subr.bf16.mxu0 0
          %1442 = vmatpush1.bf16.msra.mxu0 %v1439
          %1443 = vmatprep.subr.bf16.mxu0 0
          %1444 = vmatpush1.bf16.msra.mxu0 0
          %1445 = vmatprep.subr.bf16.mxu0 0
          %1446 = vmatpush1.bf16.msra.mxu0 0
          %1447 = vmatprep.subr.bf16.mxu0 0
          %1448 = vmatpush1.bf16.msra.mxu0 0
          %1449 = vmatprep.subr.bf16.mxu0 0
          %1450 = vmatpush1.bf16.msra.mxu0 0
          %1451 = vmatprep.subr.bf16.mxu0 0
          %1452 = vmatpush1.bf16.msra.mxu0 0
          %1453 = vmatprep.subr.bf16.mxu0 0
          %1454 = vmatpush1.bf16.msra.mxu0 0
          %1455 = vmatprep.subr.bf16.mxu0 0
          %1456 = vmatpush1.bf16.msra.mxu0 0
          %1457 = vmatprep.subr.bf16.mxu0 0
          %1458 = vmatpush1.bf16.msra.mxu0 0
          %1459 = vmatprep.subr.bf16.mxu0 0
          %1460 = vmatpush1.bf16.msra.mxu0 0
          %1461 = vmatprep.subr.bf16.mxu0 0
          %1462 = vmatpush1.bf16.msra.mxu0 0
          %1463 = vmatprep.subr.bf16.mxu0 0
          %1464 = vmatpush1.bf16.msra.mxu0 0
          %1465 = vmatprep.subr.bf16.mxu0 0
          %1466 = vmatpush1.bf16.msra.mxu0 0
          %1467 = vmatprep.subr.bf16.mxu0 0
          %1468 = vmatpush1.bf16.msra.mxu0 0
          %1469 = vmatprep.subr.bf16.mxu0 0
          %1470 = vmatpush1.bf16.msra.mxu0 0
          %1471 = vmatprep.subr.bf16.mxu0 0
          %1472 = vmatpush1.bf16.msra.mxu0 0
          %1473 = vmatprep.mubr.bf16.mxu0 0
          %1474 = vmatmul.mubr.bf16.gmra.mrb[0].mxu0 %v1430
          %v1475 = vpop.f32.mrb[0].mxu0
          %v1476 = vadd.f32 0.0, %v1475
          %v1477 = vpop.f32.mrb[0].mxu0
          %v1478 = vpop.f32.mrb[0].mxu0
          %v1479 = vadd.f32 0.0, %v1478
          %v1480 = vpop.f32.mrb[0].mxu0
          %1481 = vmatprep.mubr.bf16.mxu0 0
          %1482 = vmatmul.mubr.bf16.gmra.mrb[0].mxu0 %v1433
          %v1483 = vpop.f32.mrb[0].mxu0
          %v1484 = vadd.f32 0.0, %v1483
          %v1485 = vpop.f32.mrb[0].mxu0
          %v1486 = vpop.f32.mrb[0].mxu0
          %v1487 = vadd.f32 0.0, %v1486
          %v1488 = vpop.f32.mrb[0].mxu0
          %1489 = vmatprep.mubr.bf16.mxu0 0
          %1490 = vmatmul.mubr.bf16.gmra.mrb[0].mxu0 %v1436
          %v1491 = vpop.f32.mrb[0].mxu0
          %v1492 = vadd.f32 0.0, %v1491
          %v1493 = vpop.f32.mrb[0].mxu0
          %v1494 = vpop.f32.mrb[0].mxu0
          %v1495 = vadd.f32 0.0, %v1494
          %v1496 = vpop.f32.mrb[0].mxu0
          %1497 = vdwg.mxu0
          %v1498 = vadd.f32 %v1392, %v1476
          %v1499 = vadd.f32 %v1393, %v1479
          %v1500 = vadd.f32 %v1394, %v1484
          %v1501 = vadd.f32 %v1395, %v1487
          %v1502 = vadd.f32 %v1396, %v1492
          %v1503 = vadd.f32 %v1397, %v1495
          %v1504 = vadd.f32 %v1498, %v1056
          %v1505 = vadd.f32 %v1499, %v1061
          %v1506 = vadd.f32 %v1500, %v1066
          %v1507 = vadd.f32 %v1501, %v1071
          %v1508 = vadd.f32 %v1502, %v1076
          %v1509 = vadd.f32 %v1503, %v1081
          %s1510 = sadd.s32 48, %s1089
          %s1511 = scalar_lea.vmem %s620, %s1510
          %1512 = vst.msk [vmem:[%s1511] sm:$0xff] %vm1091, %v1504
          %1513 = vst.msk [vmem:[%s1511 + $0x8] sm:$0xff] %vm1091, %v1505
          %1514 = vst.msk [vmem:[%s1511 + $0x10] sm:$0xff] %vm1091, %v1506
          %1515 = vst.msk [vmem:[%s1511 + $0x18] sm:$0xff] %vm1091, %v1507
          %1516 = vst.msk [vmem:[%s1511 + $0x20] sm:$0xff] %vm1091, %v1508
          %1517 = vst.msk [vmem:[%s1511 + $0x28] sm:$0xff] %vm1091, %v1509
          %v1518 = vld [vmem:[%s1108] sm:$0xf]
          %v1519 = vld [vmem:[%s1108 + $0x4] sm:$0x1]
          %v1520 = vld [vmem:[%s2] sm:$0xf]
          %v1521 = vld [vmem:[%s2 + $0x4] sm:$0xf]
          %v1522 = vld [vmem:[%s2 + $0x8] sm:$0xf]
          %v1523 = vld [vmem:[%s2 + $0xc] sm:$0xf]
          %v1524 = vld [vmem:[%s2 + $0x10] sm:$0xf]
          %v1525 = vld [vmem:[%s2 + $0x14] sm:$0xf]
          %s1526 = sadd.s32 6, %s635
          %s1527 = smul.addr %s1526, 4
          %s1528 = scalar_lea.vmem %s564, %s1527 [#allocation2]
          %v1529 = vld [vmem:[%s1528] sm:$0xf]
          %v1530 = vld [vmem:[%s1528 + $0x4] sm:$0x1]
          %v1531 = vld [vmem:[%s651] sm:$0xf]
          %v1532 = vld [vmem:[%s651 + $0x4] sm:$0xf]
          %v1533 = vld [vmem:[%s651 + $0x8] sm:$0xf]
          %v1534 = vld [vmem:[%s651 + $0xc] sm:$0xf]
          %v1535 = vld [vmem:[%s651 + $0x10] sm:$0xf]
          %v1536 = vld [vmem:[%s651 + $0x14] sm:$0xf]
          %v1543 = vunpack.c.l.b16 %v1531
          %v1544 = vunpack.c.l.b16 %v1532
          %v1545 = vunpack.c.l.b16 %v1533
          %v1546 = vunpack.c.l.b16 %v1534
          %v1547 = vunpack.c.l.b16 %v1535
          %v1548 = vunpack.c.l.b16 %v1536
          %v1549 = vpack.c.b16 %v1544, %v1543
          %v1550 = vpack.c.b16 %v1546, %v1545
          %v1551 = vpack.c.b16 %v1548, %v1547
          %v1554 = vunpack.c.l.b16 %v1529
          %v1555 = vunpack.c.l.b16 %v1530
          %v1556 = vpack.c.b16 %v1555, %v1554
          %v1558 = vsel %vm678, %v1549, 0
          %v1561 = vsel %vm678, %v1550, 0
          %v1564 = vsel %vm678, %v1551, 0
          %v1567 = vsel %vm688, %v1556, 0
          %1569 = vmatprep.subr.bf16.mxu0 0
          %1570 = vmatpush1.bf16.msra.mxu0 %v1567
          %1571 = vmatprep.subr.bf16.mxu0 0
          %1572 = vmatpush1.bf16.msra.mxu0 0
          %1573 = vmatprep.subr.bf16.mxu0 0
          %1574 = vmatpush1.bf16.msra.mxu0 0
          %1575 = vmatprep.subr.bf16.mxu0 0
          %1576 = vmatpush1.bf16.msra.mxu0 0
          %1577 = vmatprep.subr.bf16.mxu0 0
          %1578 = vmatpush1.bf16.msra.mxu0 0
          %1579 = vmatprep.subr.bf16.mxu0 0
          %1580 = vmatpush1.bf16.msra.mxu0 0
          %1581 = vmatprep.subr.bf16.mxu0 0
          %1582 = vmatpush1.bf16.msra.mxu0 0
          %1583 = vmatprep.subr.bf16.mxu0 0
          %1584 = vmatpush1.bf16.msra.mxu0 0
          %1585 = vmatprep.subr.bf16.mxu0 0
          %1586 = vmatpush1.bf16.msra.mxu0 0
          %1587 = vmatprep.subr.bf16.mxu0 0
          %1588 = vmatpush1.bf16.msra.mxu0 0
          %1589 = vmatprep.subr.bf16.mxu0 0
          %1590 = vmatpush1.bf16.msra.mxu0 0
          %1591 = vmatprep.subr.bf16.mxu0 0
          %1592 = vmatpush1.bf16.msra.mxu0 0
          %1593 = vmatprep.subr.bf16.mxu0 0
          %1594 = vmatpush1.bf16.msra.mxu0 0
          %1595 = vmatprep.subr.bf16.mxu0 0
          %1596 = vmatpush1.bf16.msra.mxu0 0
          %1597 = vmatprep.subr.bf16.mxu0 0
          %1598 = vmatpush1.bf16.msra.mxu0 0
          %1599 = vmatprep.subr.bf16.mxu0 0
          %1600 = vmatpush1.bf16.msra.mxu0 0
          %1601 = vmatprep.mubr.bf16.mxu0 0
          %1602 = vmatmul.mubr.bf16.gmra.mrb[0].mxu0 %v1558
          %v1603 = vpop.f32.mrb[0].mxu0
          %v1604 = vadd.f32 0.0, %v1603
          %v1605 = vpop.f32.mrb[0].mxu0
          %v1606 = vpop.f32.mrb[0].mxu0
          %v1607 = vadd.f32 0.0, %v1606
          %v1608 = vpop.f32.mrb[0].mxu0
          %1609 = vmatprep.mubr.bf16.mxu0 0
          %1610 = vmatmul.mubr.bf16.gmra.mrb[0].mxu0 %v1561
          %v1611 = vpop.f32.mrb[0].mxu0
          %v1612 = vadd.f32 0.0, %v1611
          %v1613 = vpop.f32.mrb[0].mxu0
          %v1614 = vpop.f32.mrb[0].mxu0
          %v1615 = vadd.f32 0.0, %v1614
          %v1616 = vpop.f32.mrb[0].mxu0
          %1617 = vmatprep.mubr.bf16.mxu0 0
          %1618 = vmatmul.mubr.bf16.gmra.mrb[0].mxu0 %v1564
          %v1619 = vpop.f32.mrb[0].mxu0
          %v1620 = vadd.f32 0.0, %v1619
          %v1621 = vpop.f32.mrb[0].mxu0
          %v1622 = vpop.f32.mrb[0].mxu0
          %v1623 = vadd.f32 0.0, %v1622
          %v1624 = vpop.f32.mrb[0].mxu0
          %1625 = vdwg.mxu0
          %v1632 = vunpack.c.l.b16 %v1520
          %v1633 = vunpack.c.l.b16 %v1521
          %v1634 = vunpack.c.l.b16 %v1522
          %v1635 = vunpack.c.l.b16 %v1523
          %v1636 = vunpack.c.l.b16 %v1524
          %v1637 = vunpack.c.l.b16 %v1525
          %v1638 = vpack.c.b16 %v1633, %v1632
          %v1639 = vpack.c.b16 %v1635, %v1634
          %v1640 = vpack.c.b16 %v1637, %v1636
          %v1643 = vunpack.c.l.b16 %v1518
          %v1644 = vunpack.c.l.b16 %v1519
          %v1645 = vpack.c.b16 %v1644, %v1643
          %v1647 = vsel %vm678, %v1638, 0
          %v1650 = vsel %vm678, %v1639, 0
          %v1653 = vsel %vm678, %v1640, 0
          %v1656 = vsel %vm688, %v1645, 0
          %1658 = vmatprep.subr.bf16.mxu0 0
          %1659 = vmatpush1.bf16.msra.mxu0 %v1656
          %1660 = vmatprep.subr.bf16.mxu0 0
          %1661 = vmatpush1.bf16.msra.mxu0 0
          %1662 = vmatprep.subr.bf16.mxu0 0
          %1663 = vmatpush1.bf16.msra.mxu0 0
          %1664 = vmatprep.subr.bf16.mxu0 0
          %1665 = vmatpush1.bf16.msra.mxu0 0
          %1666 = vmatprep.subr.bf16.mxu0 0
          %1667 = vmatpush1.bf16.msra.mxu0 0
          %1668 = vmatprep.subr.bf16.mxu0 0
          %1669 = vmatpush1.bf16.msra.mxu0 0
          %1670 = vmatprep.subr.bf16.mxu0 0
          %1671 = vmatpush1.bf16.msra.mxu0 0
          %1672 = vmatprep.subr.bf16.mxu0 0
          %1673 = vmatpush1.bf16.msra.mxu0 0
          %1674 = vmatprep.subr.bf16.mxu0 0
          %1675 = vmatpush1.bf16.msra.mxu0 0
          %1676 = vmatprep.subr.bf16.mxu0 0
          %1677 = vmatpush1.bf16.msra.mxu0 0
          %1678 = vmatprep.subr.bf16.mxu0 0
          %1679 = vmatpush1.bf16.msra.mxu0 0
          %1680 = vmatprep.subr.bf16.mxu0 0
          %1681 = vmatpush1.bf16.msra.mxu0 0
          %1682 = vmatprep.subr.bf16.mxu0 0
          %1683 = vmatpush1.bf16.msra.mxu0 0
          %1684 = vmatprep.subr.bf16.mxu0 0
          %1685 = vmatpush1.bf16.msra.mxu0 0
          %1686 = vmatprep.subr.bf16.mxu0 0
          %1687 = vmatpush1.bf16.msra.mxu0 0
          %1688 = vmatprep.subr.bf16.mxu0 0
          %1689 = vmatpush1.bf16.msra.mxu0 0
          %1690 = vmatprep.mubr.bf16.mxu0 0
          %1691 = vmatmul.mubr.bf16.gmra.mrb[0].mxu0 %v1647
          %v1692 = vpop.f32.mrb[0].mxu0
          %v1693 = vadd.f32 %v1604, %v1692
          %v1694 = vpop.f32.mrb[0].mxu0
          %v1695 = vpop.f32.mrb[0].mxu0
          %v1696 = vadd.f32 %v1607, %v1695
          %v1697 = vpop.f32.mrb[0].mxu0
          %1698 = vmatprep.mubr.bf16.mxu0 0
          %1699 = vmatmul.mubr.bf16.gmra.mrb[0].mxu0 %v1650
          %v1700 = vpop.f32.mrb[0].mxu0
          %v1701 = vadd.f32 %v1612, %v1700
          %v1702 = vpop.f32.mrb[0].mxu0
          %v1703 = vpop.f32.mrb[0].mxu0
          %v1704 = vadd.f32 %v1615, %v1703
          %v1705 = vpop.f32.mrb[0].mxu0
          %1706 = vmatprep.mubr.bf16.mxu0 0
          %1707 = vmatmul.mubr.bf16.gmra.mrb[0].mxu0 %v1653
          %v1708 = vpop.f32.mrb[0].mxu0
          %v1709 = vadd.f32 %v1620, %v1708
          %v1710 = vpop.f32.mrb[0].mxu0
          %v1711 = vpop.f32.mrb[0].mxu0
          %v1712 = vadd.f32 %v1623, %v1711
          %v1713 = vpop.f32.mrb[0].mxu0
          %1714 = vdwg.mxu0
          %v1715 = vld [vmem:[%s1400] sm:$0xf]
          %v1716 = vld [vmem:[%s1400 + $0x4] sm:$0x1]
          %v1717 = vld [vmem:[%s844] sm:$0xf]
          %v1718 = vld [vmem:[%s844 + $0x4] sm:$0xf]
          %v1719 = vld [vmem:[%s844 + $0x8] sm:$0xf]
          %v1720 = vld [vmem:[%s844 + $0xc] sm:$0xf]
          %v1721 = vld [vmem:[%s844 + $0x10] sm:$0xf]
          %v1722 = vld [vmem:[%s844 + $0x14] sm:$0xf]
          %v1729 = vunpack.c.l.b16 %v1717
          %v1730 = vunpack.c.l.b16 %v1718
          %v1731 = vunpack.c.l.b16 %v1719
          %v1732 = vunpack.c.l.b16 %v1720
          %v1733 = vunpack.c.l.b16 %v1721
          %v1734 = vunpack.c.l.b16 %v1722
          %v1735 = vpack.c.b16 %v1730, %v1729
          %v1736 = vpack.c.b16 %v1732, %v1731
          %v1737 = vpack.c.b16 %v1734, %v1733
          %v1740 = vunpack.c.l.b16 %v1715
          %v1741 = vunpack.c.l.b16 %v1716
          %v1742 = vpack.c.b16 %v1741, %v1740
          %v1744 = vsel %vm678, %v1735, 0
          %v1747 = vsel %vm678, %v1736, 0
          %v1750 = vsel %vm678, %v1737, 0
          %v1753 = vsel %vm688, %v1742, 0
          %1755 = vmatprep.subr.bf16.mxu0 0
          %1756 = vmatpush1.bf16.msra.mxu0 %v1753
          %1757 = vmatprep.subr.bf16.mxu0 0
          %1758 = vmatpush1.bf16.msra.mxu0 0
          %1759 = vmatprep.subr.bf16.mxu0 0
          %1760 = vmatpush1.bf16.msra.mxu0 0
          %1761 = vmatprep.subr.bf16.mxu0 0
          %1762 = vmatpush1.bf16.msra.mxu0 0
          %1763 = vmatprep.subr.bf16.mxu0 0
          %1764 = vmatpush1.bf16.msra.mxu0 0
          %1765 = vmatprep.subr.bf16.mxu0 0
          %1766 = vmatpush1.bf16.msra.mxu0 0
          %1767 = vmatprep.subr.bf16.mxu0 0
          %1768 = vmatpush1.bf16.msra.mxu0 0
          %1769 = vmatprep.subr.bf16.mxu0 0
          %1770 = vmatpush1.bf16.msra.mxu0 0
          %1771 = vmatprep.subr.bf16.mxu0 0
          %1772 = vmatpush1.bf16.msra.mxu0 0
          %1773 = vmatprep.subr.bf16.mxu0 0
          %1774 = vmatpush1.bf16.msra.mxu0 0
          %1775 = vmatprep.subr.bf16.mxu0 0
          %1776 = vmatpush1.bf16.msra.mxu0 0
          %1777 = vmatprep.subr.bf16.mxu0 0
          %1778 = vmatpush1.bf16.msra.mxu0 0
          %1779 = vmatprep.subr.bf16.mxu0 0
          %1780 = vmatpush1.bf16.msra.mxu0 0
          %1781 = vmatprep.subr.bf16.mxu0 0
          %1782 = vmatpush1.bf16.msra.mxu0 0
          %1783 = vmatprep.subr.bf16.mxu0 0
          %1784 = vmatpush1.bf16.msra.mxu0 0
          %1785 = vmatprep.subr.bf16.mxu0 0
          %1786 = vmatpush1.bf16.msra.mxu0 0
          %1787 = vmatprep.mubr.bf16.mxu0 0
          %1788 = vmatmul.mubr.bf16.gmra.mrb[0].mxu0 %v1744
          %v1789 = vpop.f32.mrb[0].mxu0
          %v1790 = vadd.f32 0.0, %v1789
          %v1791 = vpop.f32.mrb[0].mxu0
          %v1792 = vpop.f32.mrb[0].mxu0
          %v1793 = vadd.f32 0.0, %v1792
          %v1794 = vpop.f32.mrb[0].mxu0
          %1795 = vmatprep.mubr.bf16.mxu0 0
          %1796 = vmatmul.mubr.bf16.gmra.mrb[0].mxu0 %v1747
          %v1797 = vpop.f32.mrb[0].mxu0
          %v1798 = vadd.f32 0.0, %v1797
          %v1799 = vpop.f32.mrb[0].mxu0
          %v1800 = vpop.f32.mrb[0].mxu0
          %v1801 = vadd.f32 0.0, %v1800
          %v1802 = vpop.f32.mrb[0].mxu0
          %1803 = vmatprep.mubr.bf16.mxu0 0
          %1804 = vmatmul.mubr.bf16.gmra.mrb[0].mxu0 %v1750
          %v1805 = vpop.f32.mrb[0].mxu0
          %v1806 = vadd.f32 0.0, %v1805
          %v1807 = vpop.f32.mrb[0].mxu0
          %v1808 = vpop.f32.mrb[0].mxu0
          %v1809 = vadd.f32 0.0, %v1808
          %v1810 = vpop.f32.mrb[0].mxu0
          %1811 = vdwg.mxu0
          %v1812 = vadd.f32 %v1693, %v1790
          %v1813 = vadd.f32 %v1696, %v1793
          %v1814 = vadd.f32 %v1701, %v1798
          %v1815 = vadd.f32 %v1704, %v1801
          %v1816 = vadd.f32 %v1709, %v1806
          %v1817 = vadd.f32 %v1712, %v1809
          %s1818 = sadd.s32 6, %s839
          %s1819 = smul.addr %s1818, 4
          %s1820 = scalar_lea.vmem %s564, %s1819 [#allocation2]
          %v1821 = vld [vmem:[%s1820] sm:$0xf]
          %v1822 = vld [vmem:[%s1820 + $0x4] sm:$0x1]
          %v1823 = vld [vmem:[%s951] sm:$0xf]
          %v1824 = vld [vmem:[%s951 + $0x4] sm:$0xf]
          %v1825 = vld [vmem:[%s951 + $0x8] sm:$0xf]
          %v1826 = vld [vmem:[%s951 + $0xc] sm:$0xf]
          %v1827 = vld [vmem:[%s951 + $0x10] sm:$0xf]
          %v1828 = vld [vmem:[%s951 + $0x14] sm:$0xf]
          %v1835 = vunpack.c.l.b16 %v1823
          %v1836 = vunpack.c.l.b16 %v1824
          %v1837 = vunpack.c.l.b16 %v1825
          %v1838 = vunpack.c.l.b16 %v1826
          %v1839 = vunpack.c.l.b16 %v1827
          %v1840 = vunpack.c.l.b16 %v1828
          %v1841 = vpack.c.b16 %v1836, %v1835
          %v1842 = vpack.c.b16 %v1838, %v1837
          %v1843 = vpack.c.b16 %v1840, %v1839
          %v1846 = vunpack.c.l.b16 %v1821
          %v1847 = vunpack.c.l.b16 %v1822
          %v1848 = vpack.c.b16 %v1847, %v1846
          %v1850 = vsel %vm678, %v1841, 0
          %v1853 = vsel %vm678, %v1842, 0
          %v1856 = vsel %vm678, %v1843, 0
          %v1859 = vsel %vm688, %v1848, 0
          %1861 = vmatprep.subr.bf16.mxu0 0
          %1862 = vmatpush1.bf16.msra.mxu0 %v1859
          %1863 = vmatprep.subr.bf16.mxu0 0
          %1864 = vmatpush1.bf16.msra.mxu0 0
          %1865 = vmatprep.subr.bf16.mxu0 0
          %1866 = vmatpush1.bf16.msra.mxu0 0
          %1867 = vmatprep.subr.bf16.mxu0 0
          %1868 = vmatpush1.bf16.msra.mxu0 0
          %1869 = vmatprep.subr.bf16.mxu0 0
          %1870 = vmatpush1.bf16.msra.mxu0 0
          %1871 = vmatprep.subr.bf16.mxu0 0
          %1872 = vmatpush1.bf16.msra.mxu0 0
          %1873 = vmatprep.subr.bf16.mxu0 0
          %1874 = vmatpush1.bf16.msra.mxu0 0
          %1875 = vmatprep.subr.bf16.mxu0 0
          %1876 = vmatpush1.bf16.msra.mxu0 0
          %1877 = vmatprep.subr.bf16.mxu0 0
          %1878 = vmatpush1.bf16.msra.mxu0 0
          %1879 = vmatprep.subr.bf16.mxu0 0
          %1880 = vmatpush1.bf16.msra.mxu0 0
          %1881 = vmatprep.subr.bf16.mxu0 0
          %1882 = vmatpush1.bf16.msra.mxu0 0
          %1883 = vmatprep.subr.bf16.mxu0 0
          %1884 = vmatpush1.bf16.msra.mxu0 0
          %1885 = vmatprep.subr.bf16.mxu0 0
          %1886 = vmatpush1.bf16.msra.mxu0 0
          %1887 = vmatprep.subr.bf16.mxu0 0
          %1888 = vmatpush1.bf16.msra.mxu0 0
          %1889 = vmatprep.subr.bf16.mxu0 0
          %1890 = vmatpush1.bf16.msra.mxu0 0
          %1891 = vmatprep.subr.bf16.mxu0 0
          %1892 = vmatpush1.bf16.msra.mxu0 0
          %1893 = vmatprep.mubr.bf16.mxu0 0
          %1894 = vmatmul.mubr.bf16.gmra.mrb[0].mxu0 %v1850
          %v1895 = vpop.f32.mrb[0].mxu0
          %v1896 = vadd.f32 0.0, %v1895
          %v1897 = vpop.f32.mrb[0].mxu0
          %v1898 = vpop.f32.mrb[0].mxu0
          %v1899 = vadd.f32 0.0, %v1898
          %v1900 = vpop.f32.mrb[0].mxu0
          %1901 = vmatprep.mubr.bf16.mxu0 0
          %1902 = vmatmul.mubr.bf16.gmra.mrb[0].mxu0 %v1853
          %v1903 = vpop.f32.mrb[0].mxu0
          %v1904 = vadd.f32 0.0, %v1903
          %v1905 = vpop.f32.mrb[0].mxu0
          %v1906 = vpop.f32.mrb[0].mxu0
          %v1907 = vadd.f32 0.0, %v1906
          %v1908 = vpop.f32.mrb[0].mxu0
          %1909 = vmatprep.mubr.bf16.mxu0 0
          %1910 = vmatmul.mubr.bf16.gmra.mrb[0].mxu0 %v1856
          %v1911 = vpop.f32.mrb[0].mxu0
          %v1912 = vadd.f32 0.0, %v1911
          %v1913 = vpop.f32.mrb[0].mxu0
          %v1914 = vpop.f32.mrb[0].mxu0
          %v1915 = vadd.f32 0.0, %v1914
          %v1916 = vpop.f32.mrb[0].mxu0
          %1917 = vdwg.mxu0
          %v1918 = vadd.f32 %v1812, %v1896
          %v1919 = vadd.f32 %v1813, %v1899
          %v1920 = vadd.f32 %v1814, %v1904
          %v1921 = vadd.f32 %v1815, %v1907
          %v1922 = vadd.f32 %v1816, %v1912
          %v1923 = vadd.f32 %v1817, %v1915
          %v1924 = vadd.f32 %v1918, %v1056
          %v1925 = vadd.f32 %v1919, %v1061
          %v1926 = vadd.f32 %v1920, %v1066
          %v1927 = vadd.f32 %v1921, %v1071
          %v1928 = vadd.f32 %v1922, %v1076
          %v1929 = vadd.f32 %v1923, %v1081
          %s1930 = sadd.s32 96, %s1089
          %s1931 = scalar_lea.vmem %s620, %s1930
          %1932 = vst.msk [vmem:[%s1931] sm:$0xff] %vm1091, %v1924
          %1933 = vst.msk [vmem:[%s1931 + $0x8] sm:$0xff] %vm1091, %v1925
          %1934 = vst.msk [vmem:[%s1931 + $0x10] sm:$0xff] %vm1091, %v1926
          %1935 = vst.msk [vmem:[%s1931 + $0x18] sm:$0xff] %vm1091, %v1927
          %1936 = vst.msk [vmem:[%s1931 + $0x20] sm:$0xff] %vm1091, %v1928
          %1937 = vst.msk [vmem:[%s1931 + $0x28] sm:$0xff] %vm1091, %v1929
          %v1938 = vld [vmem:[%s1528] sm:$0xf]
          %v1939 = vld [vmem:[%s1528 + $0x4] sm:$0x1]
          %v1940 = vld [vmem:[%s2] sm:$0xf]
          %v1941 = vld [vmem:[%s2 + $0x4] sm:$0xf]
          %v1942 = vld [vmem:[%s2 + $0x8] sm:$0xf]
          %v1943 = vld [vmem:[%s2 + $0xc] sm:$0xf]
          %v1944 = vld [vmem:[%s2 + $0x10] sm:$0xf]
          %v1945 = vld [vmem:[%s2 + $0x14] sm:$0xf]
          %s1946 = smul.u32 %s630, 2
          %s1947 = smul.addr %s1946, 4
          %s1948 = scalar_lea.vmem %s571, %s1947 [#allocation3]
          %v1949 = vld [vmem:[%s1948] sm:$0xf]
          %v1950 = vld [vmem:[%s1948 + $0x4] sm:$0x1]
          %v1951 = vld [vmem:[%s651] sm:$0xf]
          %v1952 = vld [vmem:[%s651 + $0x4] sm:$0xf]
          %v1953 = vld [vmem:[%s651 + $0x8] sm:$0xf]
          %v1954 = vld [vmem:[%s651 + $0xc] sm:$0xf]
          %v1955 = vld [vmem:[%s651 + $0x10] sm:$0xf]
          %v1956 = vld [vmem:[%s651 + $0x14] sm:$0xf]
          %v1963 = vunpack.c.l.b16 %v1951
          %v1964 = vunpack.c.l.b16 %v1952
          %v1965 = vunpack.c.l.b16 %v1953
          %v1966 = vunpack.c.l.b16 %v1954
          %v1967 = vunpack.c.l.b16 %v1955
          %v1968 = vunpack.c.l.b16 %v1956
          %v1969 = vpack.c.b16 %v1964, %v1963
          %v1970 = vpack.c.b16 %v1966, %v1965
          %v1971 = vpack.c.b16 %v1968, %v1967
          %v1974 = vunpack.c.l.b16 %v1949
          %v1975 = vunpack.c.l.b16 %v1950
          %v1976 = vpack.c.b16 %v1975, %v1974
          %v1978 = vsel %vm678, %v1969, 0
          %v1981 = vsel %vm678, %v1970, 0
          %v1984 = vsel %vm678, %v1971, 0
          %v1987 = vsel %vm688, %v1976, 0
          %1989 = vmatprep.subr.bf16.mxu0 0
          %1990 = vmatpush1.bf16.msra.mxu0 %v1987
          %1991 = vmatprep.subr.bf16.mxu0 0
          %1992 = vmatpush1.bf16.msra.mxu0 0
          %1993 = vmatprep.subr.bf16.mxu0 0
          %1994 = vmatpush1.bf16.msra.mxu0 0
          %1995 = vmatprep.subr.bf16.mxu0 0
          %1996 = vmatpush1.bf16.msra.mxu0 0
          %1997 = vmatprep.subr.bf16.mxu0 0
          %1998 = vmatpush1.bf16.msra.mxu0 0
          %1999 = vmatprep.subr.bf16.mxu0 0
          %2000 = vmatpush1.bf16.msra.mxu0 0
          %2001 = vmatprep.subr.bf16.mxu0 0
          %2002 = vmatpush1.bf16.msra.mxu0 0
          %2003 = vmatprep.subr.bf16.mxu0 0
          %2004 = vmatpush1.bf16.msra.mxu0 0
          %2005 = vmatprep.subr.bf16.mxu0 0
          %2006 = vmatpush1.bf16.msra.mxu0 0
          %2007 = vmatprep.subr.bf16.mxu0 0
          %2008 = vmatpush1.bf16.msra.mxu0 0
          %2009 = vmatprep.subr.bf16.mxu0 0
          %2010 = vmatpush1.bf16.msra.mxu0 0
          %2011 = vmatprep.subr.bf16.mxu0 0
          %2012 = vmatpush1.bf16.msra.mxu0 0
          %2013 = vmatprep.subr.bf16.mxu0 0
          %2014 = vmatpush1.bf16.msra.mxu0 0
          %2015 = vmatprep.subr.bf16.mxu0 0
          %2016 = vmatpush1.bf16.msra.mxu0 0
          %2017 = vmatprep.subr.bf16.mxu0 0
          %2018 = vmatpush1.bf16.msra.mxu0 0
          %2019 = vmatprep.subr.bf16.mxu0 0
          %2020 = vmatpush1.bf16.msra.mxu0 0
          %2021 = vmatprep.mubr.bf16.mxu0 0
          %2022 = vmatmul.mubr.bf16.gmra.mrb[0].mxu0 %v1978
          %v2023 = vpop.f32.mrb[0].mxu0
          %v2024 = vadd.f32 0.0, %v2023
          %v2025 = vpop.f32.mrb[0].mxu0
          %v2026 = vpop.f32.mrb[0].mxu0
          %v2027 = vadd.f32 0.0, %v2026
          %v2028 = vpop.f32.mrb[0].mxu0
          %2029 = vmatprep.mubr.bf16.mxu0 0
          %2030 = vmatmul.mubr.bf16.gmra.mrb[0].mxu0 %v1981
          %v2031 = vpop.f32.mrb[0].mxu0
          %v2032 = vadd.f32 0.0, %v2031
          %v2033 = vpop.f32.mrb[0].mxu0
          %v2034 = vpop.f32.mrb[0].mxu0
          %v2035 = vadd.f32 0.0, %v2034
          %v2036 = vpop.f32.mrb[0].mxu0
          %2037 = vmatprep.mubr.bf16.mxu0 0
          %2038 = vmatmul.mubr.bf16.gmra.mrb[0].mxu0 %v1984
          %v2039 = vpop.f32.mrb[0].mxu0
          %v2040 = vadd.f32 0.0, %v2039
          %v2041 = vpop.f32.mrb[0].mxu0
          %v2042 = vpop.f32.mrb[0].mxu0
          %v2043 = vadd.f32 0.0, %v2042
          %v2044 = vpop.f32.mrb[0].mxu0
          %2045 = vdwg.mxu0
          %v2052 = vunpack.c.l.b16 %v1940
          %v2053 = vunpack.c.l.b16 %v1941
          %v2054 = vunpack.c.l.b16 %v1942
          %v2055 = vunpack.c.l.b16 %v1943
          %v2056 = vunpack.c.l.b16 %v1944
          %v2057 = vunpack.c.l.b16 %v1945
          %v2058 = vpack.c.b16 %v2053, %v2052
          %v2059 = vpack.c.b16 %v2055, %v2054
          %v2060 = vpack.c.b16 %v2057, %v2056
          %v2063 = vunpack.c.l.b16 %v1938
          %v2064 = vunpack.c.l.b16 %v1939
          %v2065 = vpack.c.b16 %v2064, %v2063
          %v2067 = vsel %vm678, %v2058, 0
          %v2070 = vsel %vm678, %v2059, 0
          %v2073 = vsel %vm678, %v2060, 0
          %v2076 = vsel %vm688, %v2065, 0
          %2078 = vmatprep.subr.bf16.mxu0 0
          %2079 = vmatpush1.bf16.msra.mxu0 %v2076
          %2080 = vmatprep.subr.bf16.mxu0 0
          %2081 = vmatpush1.bf16.msra.mxu0 0
          %2082 = vmatprep.subr.bf16.mxu0 0
          %2083 = vmatpush1.bf16.msra.mxu0 0
          %2084 = vmatprep.subr.bf16.mxu0 0
          %2085 = vmatpush1.bf16.msra.mxu0 0
          %2086 = vmatprep.subr.bf16.mxu0 0
          %2087 = vmatpush1.bf16.msra.mxu0 0
          %2088 = vmatprep.subr.bf16.mxu0 0
          %2089 = vmatpush1.bf16.msra.mxu0 0
          %2090 = vmatprep.subr.bf16.mxu0 0
          %2091 = vmatpush1.bf16.msra.mxu0 0
          %2092 = vmatprep.subr.bf16.mxu0 0
          %2093 = vmatpush1.bf16.msra.mxu0 0
          %2094 = vmatprep.subr.bf16.mxu0 0
          %2095 = vmatpush1.bf16.msra.mxu0 0
          %2096 = vmatprep.subr.bf16.mxu0 0
          %2097 = vmatpush1.bf16.msra.mxu0 0
          %2098 = vmatprep.subr.bf16.mxu0 0
          %2099 = vmatpush1.bf16.msra.mxu0 0
          %2100 = vmatprep.subr.bf16.mxu0 0
          %2101 = vmatpush1.bf16.msra.mxu0 0
          %2102 = vmatprep.subr.bf16.mxu0 0
          %2103 = vmatpush1.bf16.msra.mxu0 0
          %2104 = vmatprep.subr.bf16.mxu0 0
          %2105 = vmatpush1.bf16.msra.mxu0 0
          %2106 = vmatprep.subr.bf16.mxu0 0
          %2107 = vmatpush1.bf16.msra.mxu0 0
          %2108 = vmatprep.subr.bf16.mxu0 0
          %2109 = vmatpush1.bf16.msra.mxu0 0
          %2110 = vmatprep.mubr.bf16.mxu0 0
          %2111 = vmatmul.mubr.bf16.gmra.mrb[0].mxu0 %v2067
          %v2112 = vpop.f32.mrb[0].mxu0
          %v2113 = vadd.f32 %v2024, %v2112
          %v2114 = vpop.f32.mrb[0].mxu0
          %v2115 = vpop.f32.mrb[0].mxu0
          %v2116 = vadd.f32 %v2027, %v2115
          %v2117 = vpop.f32.mrb[0].mxu0
          %2118 = vmatprep.mubr.bf16.mxu0 0
          %2119 = vmatmul.mubr.bf16.gmra.mrb[0].mxu0 %v2070
          %v2120 = vpop.f32.mrb[0].mxu0
          %v2121 = vadd.f32 %v2032, %v2120
          %v2122 = vpop.f32.mrb[0].mxu0
          %v2123 = vpop.f32.mrb[0].mxu0
          %v2124 = vadd.f32 %v2035, %v2123
          %v2125 = vpop.f32.mrb[0].mxu0
          %2126 = vmatprep.mubr.bf16.mxu0 0
          %2127 = vmatmul.mubr.bf16.gmra.mrb[0].mxu0 %v2073
          %v2128 = vpop.f32.mrb[0].mxu0
          %v2129 = vadd.f32 %v2040, %v2128
          %v2130 = vpop.f32.mrb[0].mxu0
          %v2131 = vpop.f32.mrb[0].mxu0
          %v2132 = vadd.f32 %v2043, %v2131
          %v2133 = vpop.f32.mrb[0].mxu0
          %2134 = vdwg.mxu0
          %v2135 = vld [vmem:[%s1820] sm:$0xf]
          %v2136 = vld [vmem:[%s1820 + $0x4] sm:$0x1]
          %v2137 = vld [vmem:[%s844] sm:$0xf]
          %v2138 = vld [vmem:[%s844 + $0x4] sm:$0xf]
          %v2139 = vld [vmem:[%s844 + $0x8] sm:$0xf]
          %v2140 = vld [vmem:[%s844 + $0xc] sm:$0xf]
          %v2141 = vld [vmem:[%s844 + $0x10] sm:$0xf]
          %v2142 = vld [vmem:[%s844 + $0x14] sm:$0xf]
          %v2149 = vunpack.c.l.b16 %v2137
          %v2150 = vunpack.c.l.b16 %v2138
          %v2151 = vunpack.c.l.b16 %v2139
          %v2152 = vunpack.c.l.b16 %v2140
          %v2153 = vunpack.c.l.b16 %v2141
          %v2154 = vunpack.c.l.b16 %v2142
          %v2155 = vpack.c.b16 %v2150, %v2149
          %v2156 = vpack.c.b16 %v2152, %v2151
          %v2157 = vpack.c.b16 %v2154, %v2153
          %v2160 = vunpack.c.l.b16 %v2135
          %v2161 = vunpack.c.l.b16 %v2136
          %v2162 = vpack.c.b16 %v2161, %v2160
          %v2164 = vsel %vm678, %v2155, 0
          %v2167 = vsel %vm678, %v2156, 0
          %v2170 = vsel %vm678, %v2157, 0
          %v2173 = vsel %vm688, %v2162, 0
          %2175 = vmatprep.subr.bf16.mxu0 0
          %2176 = vmatpush1.bf16.msra.mxu0 %v2173
          %2177 = vmatprep.subr.bf16.mxu0 0
          %2178 = vmatpush1.bf16.msra.mxu0 0
          %2179 = vmatprep.subr.bf16.mxu0 0
          %2180 = vmatpush1.bf16.msra.mxu0 0
          %2181 = vmatprep.subr.bf16.mxu0 0
          %2182 = vmatpush1.bf16.msra.mxu0 0
          %2183 = vmatprep.subr.bf16.mxu0 0
          %2184 = vmatpush1.bf16.msra.mxu0 0
          %2185 = vmatprep.subr.bf16.mxu0 0
          %2186 = vmatpush1.bf16.msra.mxu0 0
          %2187 = vmatprep.subr.bf16.mxu0 0
          %2188 = vmatpush1.bf16.msra.mxu0 0
          %2189 = vmatprep.subr.bf16.mxu0 0
          %2190 = vmatpush1.bf16.msra.mxu0 0
          %2191 = vmatprep.subr.bf16.mxu0 0
          %2192 = vmatpush1.bf16.msra.mxu0 0
          %2193 = vmatprep.subr.bf16.mxu0 0
          %2194 = vmatpush1.bf16.msra.mxu0 0
          %2195 = vmatprep.subr.bf16.mxu0 0
          %2196 = vmatpush1.bf16.msra.mxu0 0
          %2197 = vmatprep.subr.bf16.mxu0 0
          %2198 = vmatpush1.bf16.msra.mxu0 0
          %2199 = vmatprep.subr.bf16.mxu0 0
          %2200 = vmatpush1.bf16.msra.mxu0 0
          %2201 = vmatprep.subr.bf16.mxu0 0
          %2202 = vmatpush1.bf16.msra.mxu0 0
          %2203 = vmatprep.subr.bf16.mxu0 0
          %2204 = vmatpush1.bf16.msra.mxu0 0
          %2205 = vmatprep.subr.bf16.mxu0 0
          %2206 = vmatpush1.bf16.msra.mxu0 0
          %2207 = vmatprep.mubr.bf16.mxu0 0
          %2208 = vmatmul.mubr.bf16.gmra.mrb[0].mxu0 %v2164
          %v2209 = vpop.f32.mrb[0].mxu0
          %v2210 = vadd.f32 0.0, %v2209
          %v2211 = vpop.f32.mrb[0].mxu0
          %v2212 = vpop.f32.mrb[0].mxu0
          %v2213 = vadd.f32 0.0, %v2212
          %v2214 = vpop.f32.mrb[0].mxu0
          %2215 = vmatprep.mubr.bf16.mxu0 0
          %2216 = vmatmul.mubr.bf16.gmra.mrb[0].mxu0 %v2167
          %v2217 = vpop.f32.mrb[0].mxu0
          %v2218 = vadd.f32 0.0, %v2217
          %v2219 = vpop.f32.mrb[0].mxu0
          %v2220 = vpop.f32.mrb[0].mxu0
          %v2221 = vadd.f32 0.0, %v2220
          %v2222 = vpop.f32.mrb[0].mxu0
          %2223 = vmatprep.mubr.bf16.mxu0 0
          %2224 = vmatmul.mubr.bf16.gmra.mrb[0].mxu0 %v2170
          %v2225 = vpop.f32.mrb[0].mxu0
          %v2226 = vadd.f32 0.0, %v2225
          %v2227 = vpop.f32.mrb[0].mxu0
          %v2228 = vpop.f32.mrb[0].mxu0
          %v2229 = vadd.f32 0.0, %v2228
          %v2230 = vpop.f32.mrb[0].mxu0
          %2231 = vdwg.mxu0
          %v2232 = vadd.f32 %v2113, %v2210
          %v2233 = vadd.f32 %v2116, %v2213
          %v2234 = vadd.f32 %v2121, %v2218
          %v2235 = vadd.f32 %v2124, %v2221
          %v2236 = vadd.f32 %v2129, %v2226
          %v2237 = vadd.f32 %v2132, %v2229
          %s2238 = smul.u32 %s838, 2
          %s2239 = smul.addr %s2238, 4
          %s2240 = scalar_lea.vmem %s571, %s2239 [#allocation3]
          %v2241 = vld [vmem:[%s2240] sm:$0xf]
          %v2242 = vld [vmem:[%s2240 + $0x4] sm:$0x1]
          %v2243 = vld [vmem:[%s951] sm:$0xf]
          %v2244 = vld [vmem:[%s951 + $0x4] sm:$0xf]
          %v2245 = vld [vmem:[%s951 + $0x8] sm:$0xf]
          %v2246 = vld [vmem:[%s951 + $0xc] sm:$0xf]
          %v2247 = vld [vmem:[%s951 + $0x10] sm:$0xf]
          %v2248 = vld [vmem:[%s951 + $0x14] sm:$0xf]
          %v2255 = vunpack.c.l.b16 %v2243
          %v2256 = vunpack.c.l.b16 %v2244
          %v2257 = vunpack.c.l.b16 %v2245
          %v2258 = vunpack.c.l.b16 %v2246
          %v2259 = vunpack.c.l.b16 %v2247
          %v2260 = vunpack.c.l.b16 %v2248
          %v2261 = vpack.c.b16 %v2256, %v2255
          %v2262 = vpack.c.b16 %v2258, %v2257
          %v2263 = vpack.c.b16 %v2260, %v2259
          %v2266 = vunpack.c.l.b16 %v2241
          %v2267 = vunpack.c.l.b16 %v2242
          %v2268 = vpack.c.b16 %v2267, %v2266
          %v2270 = vsel %vm678, %v2261, 0
          %v2273 = vsel %vm678, %v2262, 0
          %v2276 = vsel %vm678, %v2263, 0
          %v2279 = vsel %vm688, %v2268, 0
          %2281 = vmatprep.subr.bf16.mxu0 0
          %2282 = vmatpush1.bf16.msra.mxu0 %v2279
          %2283 = vmatprep.subr.bf16.mxu0 0
          %2284 = vmatpush1.bf16.msra.mxu0 0
          %2285 = vmatprep.subr.bf16.mxu0 0
          %2286 = vmatpush1.bf16.msra.mxu0 0
          %2287 = vmatprep.subr.bf16.mxu0 0
          %2288 = vmatpush1.bf16.msra.mxu0 0
          %2289 = vmatprep.subr.bf16.mxu0 0
          %2290 = vmatpush1.bf16.msra.mxu0 0
          %2291 = vmatprep.subr.bf16.mxu0 0
          %2292 = vmatpush1.bf16.msra.mxu0 0
          %2293 = vmatprep.subr.bf16.mxu0 0
          %2294 = vmatpush1.bf16.msra.mxu0 0
          %2295 = vmatprep.subr.bf16.mxu0 0
          %2296 = vmatpush1.bf16.msra.mxu0 0
          %2297 = vmatprep.subr.bf16.mxu0 0
          %2298 = vmatpush1.bf16.msra.mxu0 0
          %2299 = vmatprep.subr.bf16.mxu0 0
          %2300 = vmatpush1.bf16.msra.mxu0 0
          %2301 = vmatprep.subr.bf16.mxu0 0
          %2302 = vmatpush1.bf16.msra.mxu0 0
          %2303 = vmatprep.subr.bf16.mxu0 0
          %2304 = vmatpush1.bf16.msra.mxu0 0
          %2305 = vmatprep.subr.bf16.mxu0 0
          %2306 = vmatpush1.bf16.msra.mxu0 0
          %2307 = vmatprep.subr.bf16.mxu0 0
          %2308 = vmatpush1.bf16.msra.mxu0 0
          %2309 = vmatprep.subr.bf16.mxu0 0
          %2310 = vmatpush1.bf16.msra.mxu0 0
          %2311 = vmatprep.subr.bf16.mxu0 0
          %2312 = vmatpush1.bf16.msra.mxu0 0
          %2313 = vmatprep.mubr.bf16.mxu0 0
          %2314 = vmatmul.mubr.bf16.gmra.mrb[0].mxu0 %v2270
          %v2315 = vpop.f32.mrb[0].mxu0
          %v2316 = vadd.f32 0.0, %v2315
          %v2317 = vpop.f32.mrb[0].mxu0
          %v2318 = vpop.f32.mrb[0].mxu0
          %v2319 = vadd.f32 0.0, %v2318
          %v2320 = vpop.f32.mrb[0].mxu0
          %2321 = vmatprep.mubr.bf16.mxu0 0
          %2322 = vmatmul.mubr.bf16.gmra.mrb[0].mxu0 %v2273
          %v2323 = vpop.f32.mrb[0].mxu0
          %v2324 = vadd.f32 0.0, %v2323
          %v2325 = vpop.f32.mrb[0].mxu0
          %v2326 = vpop.f32.mrb[0].mxu0
          %v2327 = vadd.f32 0.0, %v2326
          %v2328 = vpop.f32.mrb[0].mxu0
          %2329 = vmatprep.mubr.bf16.mxu0 0
          %2330 = vmatmul.mubr.bf16.gmra.mrb[0].mxu0 %v2276
          %v2331 = vpop.f32.mrb[0].mxu0
          %v2332 = vadd.f32 0.0, %v2331
          %v2333 = vpop.f32.mrb[0].mxu0
          %v2334 = vpop.f32.mrb[0].mxu0
          %v2335 = vadd.f32 0.0, %v2334
          %v2336 = vpop.f32.mrb[0].mxu0
          %2337 = vdwg.mxu0
          %v2338 = vadd.f32 %v2232, %v2316
          %v2339 = vadd.f32 %v2233, %v2319
          %v2340 = vadd.f32 %v2234, %v2324
          %v2341 = vadd.f32 %v2235, %v2327
          %v2342 = vadd.f32 %v2236, %v2332
          %v2343 = vadd.f32 %v2237, %v2335
          %v2344 = vadd.f32 %v2338, %v1056
          %v2345 = vadd.f32 %v2339, %v1061
          %v2346 = vadd.f32 %v2340, %v1066
          %v2347 = vadd.f32 %v2341, %v1071
          %v2348 = vadd.f32 %v2342, %v1076
          %v2349 = vadd.f32 %v2343, %v1081
          %s2350 = sadd.s32 144, %s1089
          %s2351 = scalar_lea.vmem %s620, %s2350
          %2352 = vst.msk [vmem:[%s2351] sm:$0xff] %vm1091, %v2344
          %2353 = vst.msk [vmem:[%s2351 + $0x8] sm:$0xff] %vm1091, %v2345
          %2354 = vst.msk [vmem:[%s2351 + $0x10] sm:$0xff] %vm1091, %v2346
          %2355 = vst.msk [vmem:[%s2351 + $0x18] sm:$0xff] %vm1091, %v2347
          %2356 = vst.msk [vmem:[%s2351 + $0x20] sm:$0xff] %vm1091, %v2348
          %2357 = vst.msk [vmem:[%s2351 + $0x28] sm:$0xff] %vm1091, %v2349
        $region144: #{tpu_custom_call.1} parent=130 // loop_footer
          %s634 = sadd.s32 1, %s630
        $region145: #{tpu_custom_call.1} parent=130 // loop_footer_branch
          %629 = sbr.rel target = $region141
        $region146: #{tpu_custom_call.1} parent=130 // loop_exit
          _
        %s2358 = smul.u32 4, %s20
        %p2359 = scmp.lt.s32.totalorder %s19, 1
        %s2360 = scalar_select %p2359, %s19, 1
        %p2361 = scmp.lt.s32.totalorder %s2358, 3
        %s2362 = scalar_select %p2361, %s2358, 3
        %s2363 = smul.addr %s2362, 6
        %s2364 = smul.addr %s2360, 72
        %s2365 = sadd.s32 %s2363, %s2364
        %s2366 = smul.addr %s2365, 8
        %s2367 = scalar_lea.vmem %s4, %s2366
        // Predicated region
        $region147: #{tpu_custom_call.1} parent=130 // pred_check
          %p2368 = pneg %p149
        $region148: #{tpu_custom_call.1} parent=130 // pred_check_branch
          %2370 = sbr.rel (%p2368) target = $region150
        $region149: #{tpu_custom_call.1} parent=130 // pred_region
          %s2371 = smul.u32 4, %s20
        $region150: #{tpu_custom_call.1} parent=130 // pred_fallthru
          _
      $region131: #{tpu_custom_call.1} parent=5 // pred_fallthru
        _
      %p2372 = scmp.le.s32.totalorder 2, %s10
      // Predicated region
      $region151: #{tpu_custom_call.1} parent=5 // pred_check
        %p2373 = pneg %p2372
      $region152: #{tpu_custom_call.1} parent=5 // pred_check_branch
        %2375 = sbr.rel (%p2373) target = $region154
      $region153: #{tpu_custom_call.1} parent=5 // pred_region
        %s2376 = ssub.s32 %s10, 2
        // Predicated region
        $region155: #{tpu_custom_call.1} parent=153 // pred_check
          %p2377 = pneg %p155
        $region156: #{tpu_custom_call.1} parent=153 // pred_check_branch
          %2379 = sbr.rel (%p2377) target = $region158
        $region157: #{tpu_custom_call.1} parent=153 // pred_region
          %s2380 = smul.u32 4, %s22
          %p2381 = scmp.lt.s32.totalorder %s21, 1
          %s2382 = scalar_select %p2381, %s21, 1
          %p2383 = scmp.lt.s32.totalorder %s2380, 3
          %s2384 = scalar_select %p2383, %s2380, 3
          %s2385 = smul.addr %s2384, 6
          %s2386 = smul.addr %s2382, 72
          %s2387 = sadd.s32 %s2385, %s2386
          %s2388 = smul.addr %s2387, 8
          %s2389 = scalar_lea.vmem %s4, %s2388
        $region158: #{tpu_custom_call.1} parent=153 // pred_fallthru
          _
      $region154: #{tpu_custom_call.1} parent=5 // pred_fallthru
        _
    $region6: #{tpu_custom_call.1} parent=1 // loop_footer
      %s14 = sadd.s32 1, %s10
    $region7: #{tpu_custom_call.1} parent=1 // loop_footer_branch
      %9 = sbr.rel target = $region3
    $region8: #{tpu_custom_call.1} parent=1 // loop_exit
      _

</llo_original>
